<compile_context>
chip_gen: v6e
topology: v6e:2x2x1
jax: 0.10.0
libtpu: 0.0.40
codegen_flags: <defaults>
</compile_context>

<pallas_src>
import functools

import jax
import jax.numpy as jnp
from jax.experimental import pallas as pl
from jax.experimental.pallas import tpu as pltpu


# ---------------------------------------------------------------------------
# Generation-dependent budgets
# ---------------------------------------------------------------------------
def _tpu_budget():
    """Return (tile_cap, vmem_limit_bytes) per TPU generation.

    v5e/v6e: 128 MiB physical VMEM -> 1024-wide lane-dense tiles, ~100 MiB scoped limit.
    v7x:      64 MiB physical VMEM ->  512-wide tiles, ~52 MiB (headroom for compiler scratch).
    Falls back to the conservative (v7x-safe) budget if the hardware query fails.
    """
    vmem = None
    try:
        info = pltpu.get_tpu_info()
        for attr in ("vmem_capacity_bytes", "vmem_bytes", "vmem_size_bytes"):
            val = getattr(info, attr, None)
            if val:
                vmem = int(val)
                break
    except Exception:
        vmem = None
    if vmem is not None and vmem >= 100 * 1024 * 1024:
        return 1024, 100 * 1024 * 1024
    return 512, 52 * 1024 * 1024


def _pick_tile(n, cap):
    """Largest 128-multiple tile <= cap dividing n; small n falls back to the full dim."""
    if n % 128 != 0:
        # TODO(synk): padded/masked tiling for N not a multiple of 128; the full-dim fallback
        # is only safe for small N, so fail loudly instead of silently blowing VMEM.
        assert n <= cap, f"mini-batch size {n} must be a multiple of 128 or <= {cap}"
        return n
    t = (cap // 128) * 128
    while t >= 128:
        if n % t == 0:
            return t
        t -= 128
    return n


def _pick_row_tile(m, cap=512):
    """Row tile for the (M, M) K_uu output: multiple of 8 dividing M, <= cap (or full M)."""
    if m <= cap:
        return m
    t = (cap // 8) * 8
    while t >= 8:
        if m % t == 0:
            return t
        t -= 8
    return m


# ---------------------------------------------------------------------------
# In-kernel helpers
# ---------------------------------------------------------------------------
def _sqdist(a, b):
    """Pairwise squared distances between rows of a (P,D) and b (R,D) -> (P,R).

    The feature axis is contracted with lax.dot_general (no transposed copies); the
    row-of-norms of b is produced with a 1xD ones matmul so it lands lane-major.
    """
    aa = jnp.sum(a * a, axis=-1, keepdims=True)                              # (P, 1)
    ones_row = jnp.ones((1, b.shape[-1]), dtype=b.dtype)
    bb = jax.lax.dot_general(ones_row, b * b, (((1,), (1,)), ((), ())),
                             preferred_element_type=jnp.float32)             # (1, R)
    ab = jax.lax.dot_general(a, b, (((1,), (1,)), ((), ())),
                             preferred_element_type=jnp.float32)             # (P, R)
    return jnp.maximum(aa + bb - 2.0 * ab, 0.0)


def _kron_rowtile(sel_rows, mat, sel_full):
    """Row tile of sel @ mat @ sel^T for a 0/1 selector (Kronecker factor expansion)."""
    tmp = jax.lax.dot_general(sel_rows, mat, (((1,), (0,)), ((), ())),
                              preferred_element_type=jnp.float32)            # (TR, P)
    return jax.lax.dot_general(tmp, sel_full, (((1,), (1,)), ((), ())),
                               preferred_element_type=jnp.float32)           # (TR, M)


# ---------------------------------------------------------------------------
# Pallas kernel bodies
# ---------------------------------------------------------------------------
def _data_covar_body(osq_ref, ril_ref, rii_ref,
                     lat_i_ref, inp_i_ref, lat_j_ref, inp_j_ref,
                     zl_ref, zi_ref, dd_ref, ud_ref):
    """Fused data-data (TI,TJ) and inducing-data (M,TJ) covariance tiles.

    The q (latent-part) axis is folded into an in-kernel unrolled loop: one (Q,T,D) DMA per
    tile instead of Q grid steps, with local f32 accumulators.  The -0.5 RBF factor is
    pre-folded into ril/rii, so each q contributes a SINGLE exp over d2_lat + d2_inp.
    """
    i = pl.program_id(1)                                   # inner (row-tile) axis
    Q = lat_i_ref.shape[0]
    TI, TJ = lat_i_ref.shape[1], lat_j_ref.shape[1]
    M_H, M_X = zl_ref.shape[1], zi_ref.shape[1]

    dd = jnp.zeros((TI, TJ), jnp.float32)
    for q in range(Q):                                     # Q small & static -> unrolled
        rl, ri, osq = ril_ref[q], rii_ref[q], osq_ref[q]
        d2 = (_sqdist(lat_i_ref[q] * rl, lat_j_ref[q] * rl) +
              _sqdist(inp_i_ref[q] * ri, inp_j_ref[q] * ri))
        dd = dd + osq * jnp.exp(-d2)                       # Kl*Ki fused -> one exp per q
    dd_ref[...] = dd

    # Inducing-data tile depends only on the column tile j: computed once per j (its output
    # block is resident across the inner i axis).  Kronecker row expansion via VPU
    # broadcast-multiply (no 0/1-selector MXU matmuls); rows written per latent-index block
    # with static slices (avoids a sublane-merging reshape).
    @pl.when(i == 0)
    def _():
        ud = jnp.zeros((M_H, M_X, TJ), jnp.float32)
        for q in range(Q):
            rl, ri, osq = ril_ref[q], rii_ref[q], osq_ref[q]
            k_lat = jnp.exp(-_sqdist(zl_ref[q] * rl, lat_j_ref[q] * rl))   # (M_H, TJ)
            k_inp = jnp.exp(-_sqdist(zi_ref[q] * ri, inp_j_ref[q] * ri))   # (M_X, TJ)
            ud = ud + osq * (k_lat[:, None, :] * k_inp[None, :, :])
        for a in range(M_H):
            ud_ref[a * M_X:(a + 1) * M_X, :] = ud[a]


def _kuu_body(osq_ref, ril_ref, rii_ref, zl_ref, zi_ref,
              pr_ref, pf_ref, rr_ref, rf_ref, kuu_ref):
    """Row tile of K_uu = sum_q kron(K_H[q], K_X[q]).

    Row-tiled over M so only a (TR, M) block (not the full (M, M)) lives in VMEM, with a
    'parallel' leading axis for v7x's two TensorCores.  The 0/1-selector matmuls are kept
    here only: K_uu is O(M^2 (M_H+M_X)) once per forward, not N^2-scale work.
    """
    Q = zl_ref.shape[0]
    acc = jnp.zeros(kuu_ref.shape, jnp.float32)
    for q in range(Q):
        rl, ri, osq = ril_ref[q], rii_ref[q], osq_ref[q]
        zl = zl_ref[q] * rl
        zi = zi_ref[q] * ri
        kl = jnp.exp(-_sqdist(zl, zl))                     # (M_H, M_H)
        ki = jnp.exp(-_sqdist(zi, zi))                     # (M_X, M_X)
        acc = acc + osq * (_kron_rowtile(pr_ref[...], kl, pf_ref[...]) *
                           _kron_rowtile(rr_ref[...], ki, rf_ref[...]))
    kuu_ref[...] = acc


def _predict_body(interp_i_ref, w_j_ref, m_ref, ddc_ref, mean_ref, cov_ref,
                  *, jitter, mxu_dtype):
    """covar tile = ddc + jitter*I(global diag) + interp_i^T @ W_j.

    W = (S - I) @ interp is precomputed outside (the (M, M) Kronecker S never enters kernel
    VMEM).  The predictive mean is computed exactly once per column tile, at the diagonal
    tile i == j where the resident interp_i block IS the j-th column tile of interp.
    """
    j = pl.program_id(0)                                   # outer / parallel axis
    i = pl.program_id(1)                                   # inner / arbitrary axis

    cov_mid = jax.lax.dot_general(interp_i_ref[...].astype(mxu_dtype),
                                  w_j_ref[...].astype(mxu_dtype),
                                  (((0,), (0,)), ((), ())),
                                  preferred_element_type=jnp.float32)        # (TI, TJ)
    cov_ref[...] = ddc_ref[...] + cov_mid

    @pl.when(i == j)   # global diagonal only crosses i == j tiles (TI == TJ)
    def _():
        r = jax.lax.broadcasted_iota(jnp.int32, cov_ref.shape, 0)
        c = jax.lax.broadcasted_iota(jnp.int32, cov_ref.shape, 1)
        cov_ref[...] += jnp.where(r == c, jnp.float32(jitter), jnp.float32(0.0))
        # mean: VPU broadcast-multiply + sublane reduce (no 1-lane-wide MXU output)
        mean_ref[...] = jnp.sum(interp_i_ref[...] * m_ref[...], axis=0, keepdims=True)


# ---------------------------------------------------------------------------
# pallas_call wrappers
# ---------------------------------------------------------------------------
def data_covars(latents, inputs, Z_lat, Z_inp, osq, ril, rii, tile_cap, vmem_limit):
    Q, N, D_H = latents.shape
    D_X = inputs.shape[-1]
    M_H, M_X = Z_lat.shape[-2], Z_inp.shape[-2]
    M = M_H * M_X
    T = _pick_tile(N, tile_cap)
    nt = N // T
    return pl.pallas_call(
        _data_covar_body,
        out_shape=(jax.ShapeDtypeStruct((N, N), jnp.float32),     # data_data_covar
                   jax.ShapeDtypeStruct((M, N), jnp.float32)),    # induc_data_covar
        grid=(nt, nt),                                            # (j outer, i inner)
        in_specs=[
            pl.BlockSpec(memory_space=pltpu.MemorySpace.SMEM),    # osq  (Q,)
            pl.BlockSpec(memory_space=pltpu.MemorySpace.SMEM),    # ril  (Q,)
            pl.BlockSpec(memory_space=pltpu.MemorySpace.SMEM),    # rii  (Q,)
            pl.BlockSpec((Q, T, D_H), lambda j, i: (0, i, 0)),    # latents row tile (all q)
            pl.BlockSpec((Q, T, D_X), lambda j, i: (0, i, 0)),    # inputs  row tile
            pl.BlockSpec((Q, T, D_H), lambda j, i: (0, j, 0)),    # latents col tile
            pl.BlockSpec((Q, T, D_X), lambda j, i: (0, j, 0)),    # inputs  col tile
            pl.BlockSpec((Q, M_H, D_H), lambda j, i: (0, 0, 0)),  # Z_lat (resident)
            pl.BlockSpec((Q, M_X, D_X), lambda j, i: (0, 0, 0)),  # Z_inp (resident)
        ],
        out_specs=(pl.BlockSpec((T, T), lambda j, i: (i, j)),
                   pl.BlockSpec((M, T), lambda j, i: (0, j))),    # resident across i
        compiler_params=pltpu.CompilerParams(
            dimension_semantics=("parallel", "arbitrary"),
            vmem_limit_bytes=vmem_limit),
    )(osq, ril, rii, latents, inputs, latents, inputs, Z_lat, Z_inp)


def kuu_covar(Z_lat, Z_inp, osq, ril, rii, P, R, vmem_limit):
    Q, M_H, D_H = Z_lat.shape
    _, M_X, D_X = Z_inp.shape
    M = M_H * M_X
    TR = _pick_row_tile(M)
    return pl.pallas_call(
        _kuu_body,
        out_shape=jax.ShapeDtypeStruct((M, M), jnp.float32),
        grid=(M // TR,),
        in_specs=[
            pl.BlockSpec(memory_space=pltpu.MemorySpace.SMEM),    # osq
            pl.BlockSpec(memory_space=pltpu.MemorySpace.SMEM),    # ril
            pl.BlockSpec(memory_space=pltpu.MemorySpace.SMEM),    # rii
            pl.BlockSpec((Q, M_H, D_H), lambda r: (0, 0, 0)),
            pl.BlockSpec((Q, M_X, D_X), lambda r: (0, 0, 0)),
            pl.BlockSpec((TR, M_H), lambda r: (r, 0)),            # P row tile
            pl.BlockSpec((M, M_H), lambda r: (0, 0)),             # P full
            pl.BlockSpec((TR, M_X), lambda r: (r, 0)),            # R row tile
            pl.BlockSpec((M, M_X), lambda r: (0, 0)),             # R full
        ],
        out_specs=pl.BlockSpec((TR, M), lambda r: (r, 0)),
        compiler_params=pltpu.CompilerParams(
            dimension_semantics=("parallel",),
            vmem_limit_bytes=vmem_limit),
    )(osq, ril, rii, Z_lat, Z_inp, P, P, R, R)


def predictive(interp, w, inducing_values, data_data, jitter, tile_cap, vmem_limit,
               mxu_dtype=jnp.float32):
    M, N = interp.shape
    T = _pick_tile(N, tile_cap)
    nt = N // T
    m_col = inducing_values.reshape(M, 1).astype(jnp.float32)
    body = functools.partial(_predict_body, jitter=float(jitter), mxu_dtype=mxu_dtype)
    mean, covar = pl.pallas_call(
        body,
        out_shape=(jax.ShapeDtypeStruct((1, N), jnp.float32),
                   jax.ShapeDtypeStruct((N, N), jnp.float32)),
        grid=(nt, nt),                                            # (j outer, i inner)
        in_specs=[pl.BlockSpec((M, T), lambda j, i: (0, i)),      # interp column tile i
                  pl.BlockSpec((M, T), lambda j, i: (0, j)),      # W column tile j (resident)
                  pl.BlockSpec((M, 1), lambda j, i: (0, 0)),      # inducing values
                  pl.BlockSpec((T, T), lambda j, i: (i, j))],     # data_data tile
        out_specs=(pl.BlockSpec((1, T), lambda j, i: (0, j)),     # mean (resident across i)
                   pl.BlockSpec((T, T), lambda j, i: (i, j))),
        compiler_params=pltpu.CompilerParams(
            dimension_semantics=("parallel", "arbitrary"),
            vmem_limit_bytes=vmem_limit),
    )(interp.astype(jnp.float32), w.astype(jnp.float32), m_col, data_data)
    return mean.reshape(N), covar


# ---------------------------------------------------------------------------
# psd_safe_cholesky-style helper (plain JAX)
# ---------------------------------------------------------------------------
def _psd_safe_cholesky(K, max_tries=4):
    """gpytorch-style psd_safe_cholesky: retry with increasing diag-scaled jitter on NaN."""
    m = K.shape[-1]
    eye = jnp.eye(m, dtype=K.dtype)
    diag_mean = jnp.mean(jnp.diagonal(K))

    def cond(state):
        i, L = state
        return jnp.logical_and(i < max_tries, jnp.logical_not(jnp.all(jnp.isfinite(L))))

    def body(state):
        i, _ = state
        jit = diag_mean * jnp.float32(1e-6) * (10.0 ** i.astype(jnp.float32))
        return i + 1, jnp.linalg.cholesky(K + jit * eye)

    _, L = jax.lax.while_loop(cond, body, (jnp.int32(0), jnp.linalg.cholesky(K)))
    return L


# ---------------------------------------------------------------------------
# Forward pass — mirrors KroneckerVariationalStrategyV1.__call__/forward (whitened q(u))
# ---------------------------------------------------------------------------
def kronecker_variational_strategy_forward(
        latents, inputs, inducing_points_latent, inducing_points_input,
        ls_lat, os_lat, ls_inp, os_inp,
        variational_mean, chol_var_covar_latent, chol_var_covar_input,
        jitter_val=1e-4, mxu_dtype=jnp.float32):
    assert latents.shape[-2] == inputs.shape[-2]
    Q, N, _ = latents.shape
    M_H = inducing_points_latent.shape[-2]
    M_X = inducing_points_input.shape[-2]
    M = M_H * M_X
    f32 = jnp.float32

    tile_cap, vmem_limit = _tpu_budget()

    osq = (os_lat * os_inp).astype(f32)                    # combined per-q outputscale
    ril = (jnp.sqrt(0.5) / ls_lat).astype(f32)             # -0.5 RBF factor folded in
    rii = (jnp.sqrt(0.5) / ls_inp).astype(f32)

    # Fused data-data / inducing-data covariances (only the needed Gram blocks)
    data_data_covar, induc_data_covar = data_covars(
        latents.astype(f32), inputs.astype(f32),
        inducing_points_latent.astype(f32), inducing_points_input.astype(f32),
        osq, ril, rii, tile_cap, vmem_limit)

    # K_uu = sum_q kron(K_H[q], K_X[q]); 0/1 selectors are only used here (once-per-forward)
    P = jnp.repeat(jnp.eye(M_H, dtype=f32), M_X, axis=0)   # (M, M_H): latent index slow
    R = jnp.tile(jnp.eye(M_X, dtype=f32), (M_H, 1))        # (M, M_X): input index fast
    K_uu = kuu_covar(inducing_points_latent.astype(f32), inducing_points_input.astype(f32),
                     osq, ril, rii, P, R, vmem_limit)

    # TODO(synk): Cholesky / triangular solve have no clean Pallas equivalent; kept in JAX
    # (psd_safe retry-with-increasing-jitter approximates gpytorch, f32 instead of f64).
    L = _psd_safe_cholesky(K_uu)
    interp = jax.scipy.linalg.solve_triangular(L, induc_data_covar, lower=True)   # (M, N)

    # W = (S - I) @ interp with S = kron(Sigma_H, Sigma_X) applied factor-wise:
    # O((M_H+M_X) M N) instead of O(M^2 N), computed ONCE (hoisted out of the per-tile body),
    # and the (M, M) S is never materialized -> predictive kernel fits v7x's 64 MiB VMEM.
    sig_h = chol_var_covar_latent @ chol_var_covar_latent.T
    sig_x = chol_var_covar_input @ chol_var_covar_input.T
    i3 = interp.reshape(M_H, M_X, N)
    w = jnp.einsum('ab,bxn->axn', sig_h, i3)
    w = jnp.einsum('xy,ayn->axn', sig_x, w).reshape(M, N) - interp

    # whitened predictive: mean = interp^T m;  covar = ddc + jitter*I + interp^T W
    # NOTE: mxu_dtype=jnp.bfloat16 gives ~2-4x MXU throughput on v5e/v6e/v7x (f32 accumulation
    # unchanged); validate the (S - I) cancellation at production M/N before enabling.
    mean, covar = predictive(interp, w, variational_mean, data_data_covar,
                             jitter_val, tile_cap, vmem_limit, mxu_dtype=mxu_dtype)
    return mean, covar


# ---------------------------------------------------------------------------
# Pure-JAX reference
# ---------------------------------------------------------------------------
def reference_forward(latents, inputs, Z_lat, Z_inp, ls_lat, os_lat, ls_inp, os_inp,
                      variational_mean, chol_lat, chol_inp, jitter_val=1e-4):
    Q, N, _ = latents.shape
    M_H, M_X = Z_lat.shape[-2], Z_inp.shape[-2]
    M = M_H * M_X

    def rbf(x, os):
        sq = jnp.sum(x * x, axis=-1)
        d2 = sq[:, :, None] + sq[:, None, :] - 2.0 * jnp.einsum('qpd,qrd->qpr', x, x)
        return os[:, None, None] * jnp.exp(-0.5 * jnp.maximum(d2, 0.0))

    fl = jnp.concatenate([latents, Z_lat], axis=-2) / ls_lat[:, None, None]
    fi = jnp.concatenate([inputs, Z_inp], axis=-2) / ls_inp[:, None, None]
    K_lat, K_inp = rbf(fl, os_lat), rbf(fi, os_inp)
    Kl_dd, Kl_ud, Kl_uu = K_lat[:, :N, :N], K_lat[:, N:, :N], K_lat[:, N:, N:]
    Ki_dd, Ki_ud, Ki_uu = K_inp[:, :N, :N], K_inp[:, N:, :N], K_inp[:, N:, N:]
    data_data = jnp.sum(Kl_dd * Ki_dd, axis=0)
    induc_data = jnp.sum(Kl_ud[:, :, None, :] * Ki_ud[:, None, :, :], axis=0).reshape(M, N)
    K_uu = jnp.sum(jax.vmap(jnp.kron)(Kl_uu, Ki_uu), axis=0)
    S = jnp.kron(chol_lat @ chol_lat.T, chol_inp @ chol_inp.T)
    L = jnp.linalg.cholesky(K_uu)
    interp = jax.scipy.linalg.solve_triangular(L, induc_data, lower=True)
    mean = interp.T @ variational_mean
    covar = data_data + jitter_val * jnp.eye(N) + interp.T @ (S - jnp.eye(M)) @ interp
    return mean, covar


if __name__ == "__main__":
    Q, N = 2, 8            # Q latent parts, mini-batch size N
    M_H, M_X = 4, 8        # inducing counts (latent / input)
    D_H, D_X = 2, 3        # latent / input dims
    M = M_H * M_X

    keys = jax.random.split(jax.random.PRNGKey(0), 7)
    latents = jax.random.normal(keys[0], (Q, N, D_H), jnp.float32)
    inputs = jax.random.normal(keys[1], (Q, N, D_X), jnp.float32)
    Z_lat = 1.5 * jax.random.normal(keys[2], (Q, M_H, D_H), jnp.float32)
    Z_inp = 1.5 * jax.random.normal(keys[3], (Q, M_X, D_X), jnp.float32)

    # deterministic "model" kernel hyper-parameters (per-q scaled RBF kernels)
    ls_lat = (1.0 + 0.25 * jnp.arange(Q)).astype(jnp.float32)
    os_lat = (1.0 + 0.10 * jnp.arange(Q)).astype(jnp.float32)
    ls_inp = (1.5 + 0.25 * jnp.arange(Q)).astype(jnp.float32)
    os_inp = (0.8 + 0.10 * jnp.arange(Q)).astype(jnp.float32)

    # deterministic variational parameters (CholeskyKroneckerVariationalDistributionV1)
    variational_mean = 0.1 * jax.random.normal(keys[4], (M,), jnp.float32)
    chol_lat = jnp.eye(M_H, dtype=jnp.float32) + \
        0.05 * jnp.tril(jax.random.normal(keys[5], (M_H, M_H), jnp.float32), k=-1)
    chol_inp = jnp.eye(M_X, dtype=jnp.float32) + \
        0.05 * jnp.tril(jax.random.normal(keys[6], (M_X, M_X), jnp.float32), k=-1)

    jitter_val = 1e-4   # gpytorch variational_cholesky_jitter default for float32

    mean, covar = kronecker_variational_strategy_forward(
        latents, inputs, Z_lat, Z_inp, ls_lat, os_lat, ls_inp, os_inp,
        variational_mean, chol_lat, chol_inp, jitter_val, mxu_dtype=jnp.float32)
    jax.block_until_ready((mean, covar))

    mean_ref, covar_ref = reference_forward(
        latents, inputs, Z_lat, Z_inp, ls_lat, os_lat, ls_inp, os_inp,
        variational_mean, chol_lat, chol_inp, jitter_val)
    jax.block_until_ready((mean_ref, covar_ref))

    assert mean.shape == (N,) and covar.shape == (N, N)
    assert bool(jnp.all(jnp.isfinite(mean))) and bool(jnp.all(jnp.isfinite(covar)))
    assert jnp.allclose(mean, mean_ref, atol=5e-2, rtol=5e-2), "predictive mean mismatch"
    assert jnp.allclose(covar, covar_ref, atol=5e-2, rtol=5e-2), "predictive covar mismatch"

    print("KERNEL_OK")
</pallas_src>

<mosaic_0001>
module attributes {stable_mosaic.version = 11 : i64} {
  func.func @_data_covar_body(%arg0: i32, %arg1: i32, %arg2: memref<2xf32, #tpu.memory_space<smem>>, %arg3: memref<2xf32, #tpu.memory_space<smem>>, %arg4: memref<2xf32, #tpu.memory_space<smem>>, %arg5: memref<2x8x2xf32, #tpu.memory_space<vmem>>, %arg6: memref<2x8x3xf32, #tpu.memory_space<vmem>>, %arg7: memref<2x8x2xf32, #tpu.memory_space<vmem>>, %arg8: memref<2x8x3xf32, #tpu.memory_space<vmem>>, %arg9: memref<2x4x2xf32, #tpu.memory_space<vmem>>, %arg10: memref<2x8x3xf32, #tpu.memory_space<vmem>>, %arg11: memref<8x8xf32, #tpu.memory_space<vmem>>, %arg12: memref<32x8xf32, #tpu.memory_space<vmem>>) attributes {dimension_semantics = [#tpu.dimension_semantics<parallel>, #tpu.dimension_semantics<arbitrary>], iteration_bounds = array<i64: 1, 1>, scalar_prefetch = 0 : i64, scratch_operands = 0 : i64, tpu.core_type = #tpu.core_type<tc>, window_params = [{transform_indices = @transform_0, window_bounds = array<i64: 2>}, {transform_indices = @transform_1, window_bounds = array<i64: 2>}, {transform_indices = @transform_2, window_bounds = array<i64: 2>}, {transform_indices = @transform_3, window_bounds = array<i64: 2, 8, 2>}, {transform_indices = @transform_4, window_bounds = array<i64: 2, 8, 3>}, {transform_indices = @transform_5, window_bounds = array<i64: 2, 8, 2>}, {transform_indices = @transform_6, window_bounds = array<i64: 2, 8, 3>}, {pipeline_mode = #tpu.pipeline_mode<synchronous>, transform_indices = @transform_7, window_bounds = array<i64: 2, 4, 2>}, {pipeline_mode = #tpu.pipeline_mode<synchronous>, transform_indices = @transform_8, window_bounds = array<i64: 2, 8, 3>}, {transform_indices = @transform_9, window_bounds = array<i64: 8, 8>}, {transform_indices = @transform_10, window_bounds = array<i64: 32, 8>}]} {
    %cst = arith.constant 0.000000e+00 : f32
    %0 = vector.broadcast %cst : f32 to vector<8x8xf32>
    %c0 = arith.constant 0 : index
    %1 = memref.load %arg3[%c0] : memref<2xf32, #tpu.memory_space<smem>>
    %c0_0 = arith.constant 0 : index
    %2 = memref.load %arg4[%c0_0] : memref<2xf32, #tpu.memory_space<smem>>
    %c0_1 = arith.constant 0 : index
    %3 = memref.load %arg2[%c0_1] : memref<2xf32, #tpu.memory_space<smem>>
    %c0_2 = arith.constant 0 : index
    %c0_3 = arith.constant 0 : index
    %c0_4 = arith.constant 0 : index
    %4 = vector.load %arg5[%c0_2, %c0_3, %c0_4] : memref<2x8x2xf32, #tpu.memory_space<vmem>>, vector<1x8x2xf32>
    %5 = vector.shape_cast %4 : vector<1x8x2xf32> to vector<8x2xf32>
    %6 = vector.broadcast %1 : f32 to vector<8x2xf32>
    %7 = arith.mulf %5, %6 : vector<8x2xf32>
    %c0_5 = arith.constant 0 : index
    %c0_6 = arith.constant 0 : index
    %c0_7 = arith.constant 0 : index
    %8 = vector.load %arg7[%c0_5, %c0_6, %c0_7] : memref<2x8x2xf32, #tpu.memory_space<vmem>>, vector<1x8x2xf32>
    %9 = vector.shape_cast %8 : vector<1x8x2xf32> to vector<8x2xf32>
    %10 = vector.broadcast %1 : f32 to vector<8x2xf32>
    %11 = arith.mulf %9, %10 : vector<8x2xf32>
    %12 = arith.mulf %7, %7 : vector<8x2xf32>
    %cst_8 = arith.constant dense<0.000000e+00> : vector<8xf32>
    %13 = vector.multi_reduction <add>, %12, %cst_8 [1] : vector<8x2xf32> to vector<8xf32>
    %14 = vector.shape_cast %13 : vector<8xf32> to vector<8x1xf32>
    %cst_9 = arith.constant 1.000000e+00 : f32
    %15 = vector.broadcast %cst_9 : f32 to vector<1x2xf32>
    %16 = arith.mulf %11, %11 : vector<8x2xf32>
    %cst_10 = arith.constant dense<0.000000e+00> : vector<1x8xf32>
    %17 = tpu.matmul %15, %16, %cst_10 {dimension_numbers = #tpu.dot_dimension_numbers<[1], [1], [0], [0], [0, 0, 1, 0], [], []>} : vector<1x2xf32>, vector<8x2xf32>, vector<1x8xf32> -> vector<1x8xf32>
    %cst_11 = arith.constant dense<0.000000e+00> : vector<8x8xf32>
    %18 = tpu.matmul %7, %11, %cst_11 {dimension_numbers = #tpu.dot_dimension_numbers<[1], [1], [0], [0], [0, 0, 1, 0], [], []>} : vector<8x2xf32>, vector<8x2xf32>, vector<8x8xf32> -> vector<8x8xf32>
    %19 = vector.broadcast %14 : vector<8x1xf32> to vector<8x8xf32>
    %20 = vector.broadcast %17 : vector<1x8xf32> to vector<8x8xf32>
    %21 = arith.addf %19, %20 : vector<8x8xf32>
    %cst_12 = arith.constant 2.000000e+00 : f32
    %22 = vector.broadcast %cst_12 : f32 to vector<8x8xf32>
    %23 = arith.mulf %22, %18 : vector<8x8xf32>
    %24 = arith.subf %21, %23 : vector<8x8xf32>
    %cst_13 = arith.constant 0.000000e+00 : f32
    %25 = vector.broadcast %cst_13 : f32 to vector<8x8xf32>
    %26 = arith.maximumf %24, %25 : vector<8x8xf32>
    %c0_14 = arith.constant 0 : index
    %c0_15 = arith.constant 0 : index
    %c0_16 = arith.constant 0 : index
    %27 = vector.load %arg6[%c0_14, %c0_15, %c0_16] : memref<2x8x3xf32, #tpu.memory_space<vmem>>, vector<1x8x3xf32>
    %28 = vector.shape_cast %27 : vector<1x8x3xf32> to vector<8x3xf32>
    %29 = vector.broadcast %2 : f32 to vector<8x3xf32>
    %30 = arith.mulf %28, %29 : vector<8x3xf32>
    %c0_17 = arith.constant 0 : index
    %c0_18 = arith.constant 0 : index
    %c0_19 = arith.constant 0 : index
    %31 = vector.load %arg8[%c0_17, %c0_18, %c0_19] : memref<2x8x3xf32, #tpu.memory_space<vmem>>, vector<1x8x3xf32>
    %32 = vector.shape_cast %31 : vector<1x8x3xf32> to vector<8x3xf32>
    %33 = vector.broadcast %2 : f32 to vector<8x3xf32>
    %34 = arith.mulf %32, %33 : vector<8x3xf32>
    %35 = arith.mulf %30, %30 : vector<8x3xf32>
    %cst_20 = arith.constant dense<0.000000e+00> : vector<8xf32>
    %36 = vector.multi_reduction <add>, %35, %cst_20 [1] : vector<8x3xf32> to vector<8xf32>
    %37 = vector.shape_cast %36 : vector<8xf32> to vector<8x1xf32>
    %cst_21 = arith.constant 1.000000e+00 : f32
    %38 = vector.broadcast %cst_21 : f32 to vector<1x3xf32>
    %39 = arith.mulf %34, %34 : vector<8x3xf32>
    %cst_22 = arith.constant dense<0.000000e+00> : vector<1x8xf32>
    %40 = tpu.matmul %38, %39, %cst_22 {dimension_numbers = #tpu.dot_dimension_numbers<[1], [1], [0], [0], [0, 0, 1, 0], [], []>} : vector<1x3xf32>, vector<8x3xf32>, vector<1x8xf32> -> vector<1x8xf32>
    %cst_23 = arith.constant dense<0.000000e+00> : vector<8x8xf32>
    %41 = tpu.matmul %30, %34, %cst_23 {dimension_numbers = #tpu.dot_dimension_numbers<[1], [1], [0], [0], [0, 0, 1, 0], [], []>} : vector<8x3xf32>, vector<8x3xf32>, vector<8x8xf32> -> vector<8x8xf32>
    %42 = vector.broadcast %37 : vector<8x1xf32> to vector<8x8xf32>
    %43 = vector.broadcast %40 : vector<1x8xf32> to vector<8x8xf32>
    %44 = arith.addf %42, %43 : vector<8x8xf32>
    %cst_24 = arith.constant 2.000000e+00 : f32
    %45 = vector.broadcast %cst_24 : f32 to vector<8x8xf32>
    %46 = arith.mulf %45, %41 : vector<8x8xf32>
    %47 = arith.subf %44, %46 : vector<8x8xf32>
    %cst_25 = arith.constant 0.000000e+00 : f32
    %48 = vector.broadcast %cst_25 : f32 to vector<8x8xf32>
    %49 = arith.maximumf %47, %48 : vector<8x8xf32>
    %50 = arith.addf %26, %49 : vector<8x8xf32>
    %cst_26 = arith.constant 0.000000e+00 : f32
    %51 = vector.broadcast %cst_26 : f32 to vector<8x8xf32>
    %52 = arith.subf %51, %50 : vector<8x8xf32>
    %53 = math.exp %52 : vector<8x8xf32>
    %54 = vector.broadcast %3 : f32 to vector<8x8xf32>
    %55 = arith.mulf %54, %53 : vector<8x8xf32>
    %56 = arith.addf %0, %55 : vector<8x8xf32>
    %c1 = arith.constant 1 : index
    %57 = memref.load %arg3[%c1] : memref<2xf32, #tpu.memory_space<smem>>
    %c1_27 = arith.constant 1 : index
    %58 = memref.load %arg4[%c1_27] : memref<2xf32, #tpu.memory_space<smem>>
    %c1_28 = arith.constant 1 : index
    %59 = memref.load %arg2[%c1_28] : memref<2xf32, #tpu.memory_space<smem>>
    %c1_29 = arith.constant 1 : index
    %c0_30 = arith.constant 0 : index
    %c0_31 = arith.constant 0 : index
    %60 = vector.load %arg5[%c1_29, %c0_30, %c0_31] : memref<2x8x2xf32, #tpu.memory_space<vmem>>, vector<1x8x2xf32>
    %61 = vector.shape_cast %60 : vector<1x8x2xf32> to vector<8x2xf32>
    %62 = vector.broadcast %57 : f32 to vector<8x2xf32>
    %63 = arith.mulf %61, %62 : vector<8x2xf32>
    %c1_32 = arith.constant 1 : index
    %c0_33 = arith.constant 0 : index
    %c0_34 = arith.constant 0 : index
    %64 = vector.load %arg7[%c1_32, %c0_33, %c0_34] : memref<2x8x2xf32, #tpu.memory_space<vmem>>, vector<1x8x2xf32>
    %65 = vector.shape_cast %64 : vector<1x8x2xf32> to vector<8x2xf32>
    %66 = vector.broadcast %57 : f32 to vector<8x2xf32>
    %67 = arith.mulf %65, %66 : vector<8x2xf32>
    %68 = arith.mulf %63, %63 : vector<8x2xf32>
    %cst_35 = arith.constant dense<0.000000e+00> : vector<8xf32>
    %69 = vector.multi_reduction <add>, %68, %cst_35 [1] : vector<8x2xf32> to vector<8xf32>
    %70 = vector.shape_cast %69 : vector<8xf32> to vector<8x1xf32>
    %cst_36 = arith.constant 1.000000e+00 : f32
    %71 = vector.broadcast %cst_36 : f32 to vector<1x2xf32>
    %72 = arith.mulf %67, %67 : vector<8x2xf32>
    %cst_37 = arith.constant dense<0.000000e+00> : vector<1x8xf32>
    %73 = tpu.matmul %71, %72, %cst_37 {dimension_numbers = #tpu.dot_dimension_numbers<[1], [1], [0], [0], [0, 0, 1, 0], [], []>} : vector<1x2xf32>, vector<8x2xf32>, vector<1x8xf32> -> vector<1x8xf32>
    %cst_38 = arith.constant dense<0.000000e+00> : vector<8x8xf32>
    %74 = tpu.matmul %63, %67, %cst_38 {dimension_numbers = #tpu.dot_dimension_numbers<[1], [1], [0], [0], [0, 0, 1, 0], [], []>} : vector<8x2xf32>, vector<8x2xf32>, vector<8x8xf32> -> vector<8x8xf32>
    %75 = vector.broadcast %70 : vector<8x1xf32> to vector<8x8xf32>
    %76 = vector.broadcast %73 : vector<1x8xf32> to vector<8x8xf32>
    %77 = arith.addf %75, %76 : vector<8x8xf32>
    %cst_39 = arith.constant 2.000000e+00 : f32
    %78 = vector.broadcast %cst_39 : f32 to vector<8x8xf32>
    %79 = arith.mulf %78, %74 : vector<8x8xf32>
    %80 = arith.subf %77, %79 : vector<8x8xf32>
    %cst_40 = arith.constant 0.000000e+00 : f32
    %81 = vector.broadcast %cst_40 : f32 to vector<8x8xf32>
    %82 = arith.maximumf %80, %81 : vector<8x8xf32>
    %c1_41 = arith.constant 1 : index
    %c0_42 = arith.constant 0 : index
    %c0_43 = arith.constant 0 : index
    %83 = vector.load %arg6[%c1_41, %c0_42, %c0_43] : memref<2x8x3xf32, #tpu.memory_space<vmem>>, vector<1x8x3xf32>
    %84 = vector.shape_cast %83 : vector<1x8x3xf32> to vector<8x3xf32>
    %85 = vector.broadcast %58 : f32 to vector<8x3xf32>
    %86 = arith.mulf %84, %85 : vector<8x3xf32>
    %c1_44 = arith.constant 1 : index
    %c0_45 = arith.constant 0 : index
    %c0_46 = arith.constant 0 : index
    %87 = vector.load %arg8[%c1_44, %c0_45, %c0_46] : memref<2x8x3xf32, #tpu.memory_space<vmem>>, vector<1x8x3xf32>
    %88 = vector.shape_cast %87 : vector<1x8x3xf32> to vector<8x3xf32>
    %89 = vector.broadcast %58 : f32 to vector<8x3xf32>
    %90 = arith.mulf %88, %89 : vector<8x3xf32>
    %91 = arith.mulf %86, %86 : vector<8x3xf32>
    %cst_47 = arith.constant dense<0.000000e+00> : vector<8xf32>
    %92 = vector.multi_reduction <add>, %91, %cst_47 [1] : vector<8x3xf32> to vector<8xf32>
    %93 = vector.shape_cast %92 : vector<8xf32> to vector<8x1xf32>
    %cst_48 = arith.constant 1.000000e+00 : f32
    %94 = vector.broadcast %cst_48 : f32 to vector<1x3xf32>
    %95 = arith.mulf %90, %90 : vector<8x3xf32>
    %cst_49 = arith.constant dense<0.000000e+00> : vector<1x8xf32>
    %96 = tpu.matmul %94, %95, %cst_49 {dimension_numbers = #tpu.dot_dimension_numbers<[1], [1], [0], [0], [0, 0, 1, 0], [], []>} : vector<1x3xf32>, vector<8x3xf32>, vector<1x8xf32> -> vector<1x8xf32>
    %cst_50 = arith.constant dense<0.000000e+00> : vector<8x8xf32>
    %97 = tpu.matmul %86, %90, %cst_50 {dimension_numbers = #tpu.dot_dimension_numbers<[1], [1], [0], [0], [0, 0, 1, 0], [], []>} : vector<8x3xf32>, vector<8x3xf32>, vector<8x8xf32> -> vector<8x8xf32>
    %98 = vector.broadcast %93 : vector<8x1xf32> to vector<8x8xf32>
    %99 = vector.broadcast %96 : vector<1x8xf32> to vector<8x8xf32>
    %100 = arith.addf %98, %99 : vector<8x8xf32>
    %cst_51 = arith.constant 2.000000e+00 : f32
    %101 = vector.broadcast %cst_51 : f32 to vector<8x8xf32>
    %102 = arith.mulf %101, %97 : vector<8x8xf32>
    %103 = arith.subf %100, %102 : vector<8x8xf32>
    %cst_52 = arith.constant 0.000000e+00 : f32
    %104 = vector.broadcast %cst_52 : f32 to vector<8x8xf32>
    %105 = arith.maximumf %103, %104 : vector<8x8xf32>
    %106 = arith.addf %82, %105 : vector<8x8xf32>
    %cst_53 = arith.constant 0.000000e+00 : f32
    %107 = vector.broadcast %cst_53 : f32 to vector<8x8xf32>
    %108 = arith.subf %107, %106 : vector<8x8xf32>
    %109 = math.exp %108 : vector<8x8xf32>
    %110 = vector.broadcast %59 : f32 to vector<8x8xf32>
    %111 = arith.mulf %110, %109 : vector<8x8xf32>
    %112 = arith.addf %56, %111 : vector<8x8xf32>
    %c0_54 = arith.constant 0 : index
    %c0_55 = arith.constant 0 : index
    %113 = vector.load %arg11[%c0_54, %c0_55] : memref<8x8xf32, #tpu.memory_space<vmem>>, vector<8x8xf32>
    tpu.vector_store %arg11[%c0_54, %c0_55], %112 {strides = array<i32>} : memref<8x8xf32, #tpu.memory_space<vmem>>, vector<8x8xf32>,
    %c0_i32 = arith.constant 0 : i32
    %114 = arith.cmpi eq, %arg1, %c0_i32 : i32
    %115 = arith.extui %114 : i1 to i32
    %c0_i32_56 = arith.constant 0 : i32
    %116 = arith.cmpi ne, %115, %c0_i32_56 : i32
    scf.if %116 {
      %cst_57 = arith.constant 0.000000e+00 : f32
      %117 = vector.broadcast %cst_57 : f32 to vector<4x8x8xf32>
      %c0_58 = arith.constant 0 : index
      %118 = memref.load %arg3[%c0_58] : memref<2xf32, #tpu.memory_space<smem>>
      %c0_59 = arith.constant 0 : index
      %119 = memref.load %arg4[%c0_59] : memref<2xf32, #tpu.memory_space<smem>>
      %c0_60 = arith.constant 0 : index
      %120 = memref.load %arg2[%c0_60] : memref<2xf32, #tpu.memory_space<smem>>
      %c0_61 = arith.constant 0 : index
      %c0_62 = arith.constant 0 : index
      %c0_63 = arith.constant 0 : index
      %121 = vector.load %arg9[%c0_61, %c0_62, %c0_63] : memref<2x4x2xf32, #tpu.memory_space<vmem>>, vector<1x4x2xf32>
      %122 = vector.shape_cast %121 : vector<1x4x2xf32> to vector<4x2xf32>
      %123 = vector.broadcast %118 : f32 to vector<4x2xf32>
      %124 = arith.mulf %122, %123 : vector<4x2xf32>
      %c0_64 = arith.constant 0 : index
      %c0_65 = arith.constant 0 : index
      %c0_66 = arith.constant 0 : index
      %125 = vector.load %arg7[%c0_64, %c0_65, %c0_66] : memref<2x8x2xf32, #tpu.memory_space<vmem>>, vector<1x8x2xf32>
      %126 = vector.shape_cast %125 : vector<1x8x2xf32> to vector<8x2xf32>
      %127 = vector.broadcast %118 : f32 to vector<8x2xf32>
      %128 = arith.mulf %126, %127 : vector<8x2xf32>
      %129 = arith.mulf %124, %124 : vector<4x2xf32>
      %cst_67 = arith.constant dense<0.000000e+00> : vector<4xf32>
      %130 = vector.multi_reduction <add>, %129, %cst_67 [1] : vector<4x2xf32> to vector<4xf32>
      %131 = vector.shape_cast %130 : vector<4xf32> to vector<4x1xf32>
      %cst_68 = arith.constant 1.000000e+00 : f32
      %132 = vector.broadcast %cst_68 : f32 to vector<1x2xf32>
      %133 = arith.mulf %128, %128 : vector<8x2xf32>
      %cst_69 = arith.constant dense<0.000000e+00> : vector<1x8xf32>
      %134 = tpu.matmul %132, %133, %cst_69 {dimension_numbers = #tpu.dot_dimension_numbers<[1], [1], [0], [0], [0, 0, 1, 0], [], []>} : vector<1x2xf32>, vector<8x2xf32>, vector<1x8xf32> -> vector<1x8xf32>
      %cst_70 = arith.constant dense<0.000000e+00> : vector<4x8xf32>
      %135 = tpu.matmul %124, %128, %cst_70 {dimension_numbers = #tpu.dot_dimension_numbers<[1], [1], [0], [0], [0, 0, 1, 0], [], []>} : vector<4x2xf32>, vector<8x2xf32>, vector<4x8xf32> -> vector<4x8xf32>
      %136 = vector.broadcast %131 : vector<4x1xf32> to vector<4x8xf32>
      %137 = vector.broadcast %134 : vector<1x8xf32> to vector<4x8xf32>
      %138 = arith.addf %136, %137 : vector<4x8xf32>
      %cst_71 = arith.constant 2.000000e+00 : f32
      %139 = vector.broadcast %cst_71 : f32 to vector<4x8xf32>
      %140 = arith.mulf %139, %135 : vector<4x8xf32>
      %141 = arith.subf %138, %140 : vector<4x8xf32>
      %cst_72 = arith.constant 0.000000e+00 : f32
      %142 = vector.broadcast %cst_72 : f32 to vector<4x8xf32>
      %143 = arith.maximumf %141, %142 : vector<4x8xf32>
      %cst_73 = arith.constant 0.000000e+00 : f32
      %144 = vector.broadcast %cst_73 : f32 to vector<4x8xf32>
      %145 = arith.subf %144, %143 : vector<4x8xf32>
      %146 = math.exp %145 : vector<4x8xf32>
      %c0_74 = arith.constant 0 : index
      %c0_75 = arith.constant 0 : index
      %c0_76 = arith.constant 0 : index
      %147 = vector.load %arg10[%c0_74, %c0_75, %c0_76] : memref<2x8x3xf32, #tpu.memory_space<vmem>>, vector<1x8x3xf32>
      %148 = vector.shape_cast %147 : vector<1x8x3xf32> to vector<8x3xf32>
      %149 = vector.broadcast %119 : f32 to vector<8x3xf32>
      %150 = arith.mulf %148, %149 : vector<8x3xf32>
      %c0_77 = arith.constant 0 : index
      %c0_78 = arith.constant 0 : index
      %c0_79 = arith.constant 0 : index
      %151 = vector.load %arg8[%c0_77, %c0_78, %c0_79] : memref<2x8x3xf32, #tpu.memory_space<vmem>>, vector<1x8x3xf32>
      %152 = vector.shape_cast %151 : vector<1x8x3xf32> to vector<8x3xf32>
      %153 = vector.broadcast %119 : f32 to vector<8x3xf32>
      %154 = arith.mulf %152, %153 : vector<8x3xf32>
      %155 = arith.mulf %150, %150 : vector<8x3xf32>
      %cst_80 = arith.constant dense<0.000000e+00> : vector<8xf32>
      %156 = vector.multi_reduction <add>, %155, %cst_80 [1] : vector<8x3xf32> to vector<8xf32>
      %157 = vector.shape_cast %156 : vector<8xf32> to vector<8x1xf32>
      %cst_81 = arith.constant 1.000000e+00 : f32
      %158 = vector.broadcast %cst_81 : f32 to vector<1x3xf32>
      %159 = arith.mulf %154, %154 : vector<8x3xf32>
      %cst_82 = arith.constant dense<0.000000e+00> : vector<1x8xf32>
      %160 = tpu.matmul %158, %159, %cst_82 {dimension_numbers = #tpu.dot_dimension_numbers<[1], [1], [0], [0], [0, 0, 1, 0], [], []>} : vector<1x3xf32>, vector<8x3xf32>, vector<1x8xf32> -> vector<1x8xf32>
      %cst_83 = arith.constant dense<0.000000e+00> : vector<8x8xf32>
      %161 = tpu.matmul %150, %154, %cst_83 {dimension_numbers = #tpu.dot_dimension_numbers<[1], [1], [0], [0], [0, 0, 1, 0], [], []>} : vector<8x3xf32>, vector<8x3xf32>, vector<8x8xf32> -> vector<8x8xf32>
      %162 = vector.broadcast %157 : vector<8x1xf32> to vector<8x8xf32>
      %163 = vector.broadcast %160 : vector<1x8xf32> to vector<8x8xf32>
      %164 = arith.addf %162, %163 : vector<8x8xf32>
      %cst_84 = arith.constant 2.000000e+00 : f32
      %165 = vector.broadcast %cst_84 : f32 to vector<8x8xf32>
      %166 = arith.mulf %165, %161 : vector<8x8xf32>
      %167 = arith.subf %164, %166 : vector<8x8xf32>
      %cst_85 = arith.constant 0.000000e+00 : f32
      %168 = vector.broadcast %cst_85 : f32 to vector<8x8xf32>
      %169 = arith.maximumf %167, %168 : vector<8x8xf32>
      %cst_86 = arith.constant 0.000000e+00 : f32
      %170 = vector.broadcast %cst_86 : f32 to vector<8x8xf32>
      %171 = arith.subf %170, %169 : vector<8x8xf32>
      %172 = math.exp %171 : vector<8x8xf32>
      %173 = vector.shape_cast %146 : vector<4x8xf32> to vector<4x1x8xf32>
      %174 = vector.shape_cast %172 : vector<8x8xf32> to vector<1x8x8xf32>
      %175 = vector.broadcast %173 : vector<4x1x8xf32> to vector<4x8x8xf32>
      %176 = vector.broadcast %174 : vector<1x8x8xf32> to vector<4x8x8xf32>
      %177 = arith.mulf %175, %176 : vector<4x8x8xf32>
      %178 = vector.broadcast %120 : f32 to vector<4x8x8xf32>
      %179 = arith.mulf %178, %177 : vector<4x8x8xf32>
      %180 = arith.addf %117, %179 : vector<4x8x8xf32>
      %c1_87 = arith.constant 1 : index
      %181 = memref.load %arg3[%c1_87] : memref<2xf32, #tpu.memory_space<smem>>
      %c1_88 = arith.constant 1 : index
      %182 = memref.load %arg4[%c1_88] : memref<2xf32, #tpu.memory_space<smem>>
      %c1_89 = arith.constant 1 : index
      %183 = memref.load %arg2[%c1_89] : memref<2xf32, #tpu.memory_space<smem>>
      %c1_90 = arith.constant 1 : index
      %c0_91 = arith.constant 0 : index
      %c0_92 = arith.constant 0 : index
      %184 = vector.load %arg9[%c1_90, %c0_91, %c0_92] : memref<2x4x2xf32, #tpu.memory_space<vmem>>, vector<1x4x2xf32>
      %185 = vector.shape_cast %184 : vector<1x4x2xf32> to vector<4x2xf32>
      %186 = vector.broadcast %181 : f32 to vector<4x2xf32>
      %187 = arith.mulf %185, %186 : vector<4x2xf32>
      %c1_93 = arith.constant 1 : index
      %c0_94 = arith.constant 0 : index
      %c0_95 = arith.constant 0 : index
      %188 = vector.load %arg7[%c1_93, %c0_94, %c0_95] : memref<2x8x2xf32, #tpu.memory_space<vmem>>, vector<1x8x2xf32>
      %189 = vector.shape_cast %188 : vector<1x8x2xf32> to vector<8x2xf32>
      %190 = vector.broadcast %181 : f32 to vector<8x2xf32>
      %191 = arith.mulf %189, %190 : vector<8x2xf32>
      %192 = arith.mulf %187, %187 : vector<4x2xf32>
      %cst_96 = arith.constant dense<0.000000e+00> : vector<4xf32>
      %193 = vector.multi_reduction <add>, %192, %cst_96 [1] : vector<4x2xf32> to vector<4xf32>
      %194 = vector.shape_cast %193 : vector<4xf32> to vector<4x1xf32>
      %cst_97 = arith.constant 1.000000e+00 : f32
      %195 = vector.broadcast %cst_97 : f32 to vector<1x2xf32>
      %196 = arith.mulf %191, %191 : vector<8x2xf32>
      %cst_98 = arith.constant dense<0.000000e+00> : vector<1x8xf32>
      %197 = tpu.matmul %195, %196, %cst_98 {dimension_numbers = #tpu.dot_dimension_numbers<[1], [1], [0], [0], [0, 0, 1, 0], [], []>} : vector<1x2xf32>, vector<8x2xf32>, vector<1x8xf32> -> vector<1x8xf32>
      %cst_99 = arith.constant dense<0.000000e+00> : vector<4x8xf32>
      %198 = tpu.matmul %187, %191, %cst_99 {dimension_numbers = #tpu.dot_dimension_numbers<[1], [1], [0], [0], [0, 0, 1, 0], [], []>} : vector<4x2xf32>, vector<8x2xf32>, vector<4x8xf32> -> vector<4x8xf32>
      %199 = vector.broadcast %194 : vector<4x1xf32> to vector<4x8xf32>
      %200 = vector.broadcast %197 : vector<1x8xf32> to vector<4x8xf32>
      %201 = arith.addf %199, %200 : vector<4x8xf32>
      %cst_100 = arith.constant 2.000000e+00 : f32
      %202 = vector.broadcast %cst_100 : f32 to vector<4x8xf32>
      %203 = arith.mulf %202, %198 : vector<4x8xf32>
      %204 = arith.subf %201, %203 : vector<4x8xf32>
      %cst_101 = arith.constant 0.000000e+00 : f32
      %205 = vector.broadcast %cst_101 : f32 to vector<4x8xf32>
      %206 = arith.maximumf %204, %205 : vector<4x8xf32>
      %cst_102 = arith.constant 0.000000e+00 : f32
      %207 = vector.broadcast %cst_102 : f32 to vector<4x8xf32>
      %208 = arith.subf %207, %206 : vector<4x8xf32>
      %209 = math.exp %208 : vector<4x8xf32>
      %c1_103 = arith.constant 1 : index
      %c0_104 = arith.constant 0 : index
      %c0_105 = arith.constant 0 : index
      %210 = vector.load %arg10[%c1_103, %c0_104, %c0_105] : memref<2x8x3xf32, #tpu.memory_space<vmem>>, vector<1x8x3xf32>
      %211 = vector.shape_cast %210 : vector<1x8x3xf32> to vector<8x3xf32>
      %212 = vector.broadcast %182 : f32 to vector<8x3xf32>
      %213 = arith.mulf %211, %212 : vector<8x3xf32>
      %c1_106 = arith.constant 1 : index
      %c0_107 = arith.constant 0 : index
      %c0_108 = arith.constant 0 : index
      %214 = vector.load %arg8[%c1_106, %c0_107, %c0_108] : memref<2x8x3xf32, #tpu.memory_space<vmem>>, vector<1x8x3xf32>
      %215 = vector.shape_cast %214 : vector<1x8x3xf32> to vector<8x3xf32>
      %216 = vector.broadcast %182 : f32 to vector<8x3xf32>
      %217 = arith.mulf %215, %216 : vector<8x3xf32>
      %218 = arith.mulf %213, %213 : vector<8x3xf32>
      %cst_109 = arith.constant dense<0.000000e+00> : vector<8xf32>
      %219 = vector.multi_reduction <add>, %218, %cst_109 [1] : vector<8x3xf32> to vector<8xf32>
      %220 = vector.shape_cast %219 : vector<8xf32> to vector<8x1xf32>
      %cst_110 = arith.constant 1.000000e+00 : f32
      %221 = vector.broadcast %cst_110 : f32 to vector<1x3xf32>
      %222 = arith.mulf %217, %217 : vector<8x3xf32>
      %cst_111 = arith.constant dense<0.000000e+00> : vector<1x8xf32>
      %223 = tpu.matmul %221, %222, %cst_111 {dimension_numbers = #tpu.dot_dimension_numbers<[1], [1], [0], [0], [0, 0, 1, 0], [], []>} : vector<1x3xf32>, vector<8x3xf32>, vector<1x8xf32> -> vector<1x8xf32>
      %cst_112 = arith.constant dense<0.000000e+00> : vector<8x8xf32>
      %224 = tpu.matmul %213, %217, %cst_112 {dimension_numbers = #tpu.dot_dimension_numbers<[1], [1], [0], [0], [0, 0, 1, 0], [], []>} : vector<8x3xf32>, vector<8x3xf32>, vector<8x8xf32> -> vector<8x8xf32>
      %225 = vector.broadcast %220 : vector<8x1xf32> to vector<8x8xf32>
      %226 = vector.broadcast %223 : vector<1x8xf32> to vector<8x8xf32>
      %227 = arith.addf %225, %226 : vector<8x8xf32>
      %cst_113 = arith.constant 2.000000e+00 : f32
      %228 = vector.broadcast %cst_113 : f32 to vector<8x8xf32>
      %229 = arith.mulf %228, %224 : vector<8x8xf32>
      %230 = arith.subf %227, %229 : vector<8x8xf32>
      %cst_114 = arith.constant 0.000000e+00 : f32
      %231 = vector.broadcast %cst_114 : f32 to vector<8x8xf32>
      %232 = arith.maximumf %230, %231 : vector<8x8xf32>
      %cst_115 = arith.constant 0.000000e+00 : f32
      %233 = vector.broadcast %cst_115 : f32 to vector<8x8xf32>
      %234 = arith.subf %233, %232 : vector<8x8xf32>
      %235 = math.exp %234 : vector<8x8xf32>
      %236 = vector.shape_cast %209 : vector<4x8xf32> to vector<4x1x8xf32>
      %237 = vector.shape_cast %235 : vector<8x8xf32> to vector<1x8x8xf32>
      %238 = vector.broadcast %236 : vector<4x1x8xf32> to vector<4x8x8xf32>
      %239 = vector.broadcast %237 : vector<1x8x8xf32> to vector<4x8x8xf32>
      %240 = arith.mulf %238, %239 : vector<4x8x8xf32>
      %241 = vector.broadcast %183 : f32 to vector<4x8x8xf32>
      %242 = arith.mulf %241, %240 : vector<4x8x8xf32>
      %243 = arith.addf %180, %242 : vector<4x8x8xf32>
      %244 = vector.extract_strided_slice %243 {offsets = [0, 0, 0], sizes = [1, 8, 8], strides = [1, 1, 1]} : vector<4x8x8xf32> to vector<1x8x8xf32>
      %245 = vector.shape_cast %244 : vector<1x8x8xf32> to vector<8x8xf32>
      %c0_116 = arith.constant 0 : index
      %c0_117 = arith.constant 0 : index
      %246 = vector.load %arg12[%c0_116, %c0_117] : memref<32x8xf32, #tpu.memory_space<vmem>>, vector<8x8xf32>
      tpu.vector_store %arg12[%c0_116, %c0_117], %245 {strides = array<i32>} : memref<32x8xf32, #tpu.memory_space<vmem>>, vector<8x8xf32>,
      %247 = vector.extract_strided_slice %243 {offsets = [1, 0, 0], sizes = [1, 8, 8], strides = [1, 1, 1]} : vector<4x8x8xf32> to vector<1x8x8xf32>
      %248 = vector.shape_cast %247 : vector<1x8x8xf32> to vector<8x8xf32>
      %c8 = arith.constant 8 : index
      %c0_118 = arith.constant 0 : index
      %249 = vector.load %arg12[%c8, %c0_118] : memref<32x8xf32, #tpu.memory_space<vmem>>, vector<8x8xf32>
      tpu.vector_store %arg12[%c8, %c0_118], %248 {strides = array<i32>} : memref<32x8xf32, #tpu.memory_space<vmem>>, vector<8x8xf32>,
      %250 = vector.extract_strided_slice %243 {offsets = [2, 0, 0], sizes = [1, 8, 8], strides = [1, 1, 1]} : vector<4x8x8xf32> to vector<1x8x8xf32>
      %251 = vector.shape_cast %250 : vector<1x8x8xf32> to vector<8x8xf32>
      %c16 = arith.constant 16 : index
      %c0_119 = arith.constant 0 : index
      %252 = vector.load %arg12[%c16, %c0_119] : memref<32x8xf32, #tpu.memory_space<vmem>>, vector<8x8xf32>
      tpu.vector_store %arg12[%c16, %c0_119], %251 {strides = array<i32>} : memref<32x8xf32, #tpu.memory_space<vmem>>, vector<8x8xf32>,
      %253 = vector.extract_strided_slice %243 {offsets = [3, 0, 0], sizes = [1, 8, 8], strides = [1, 1, 1]} : vector<4x8x8xf32> to vector<1x8x8xf32>
      %254 = vector.shape_cast %253 : vector<1x8x8xf32> to vector<8x8xf32>
      %c24 = arith.constant 24 : index
      %c0_120 = arith.constant 0 : index
      %255 = vector.load %arg12[%c24, %c0_120] : memref<32x8xf32, #tpu.memory_space<vmem>>, vector<8x8xf32>
      tpu.vector_store %arg12[%c24, %c0_120], %254 {strides = array<i32>} : memref<32x8xf32, #tpu.memory_space<vmem>>, vector<8x8xf32>,
    } else {
    }
    return
  }
  func.func @transform_0(%arg0: i32, %arg1: i32) -> i32 {
    %c0_i32 = arith.constant 0 : i32
    %c0_i32_0 = arith.constant 0 : i32
    return %c0_i32 : i32
  }
  func.func @transform_1(%arg0: i32, %arg1: i32) -> i32 {
    %c0_i32 = arith.constant 0 : i32
    %c0_i32_0 = arith.constant 0 : i32
    return %c0_i32 : i32
  }
  func.func @transform_2(%arg0: i32, %arg1: i32) -> i32 {
    %c0_i32 = arith.constant 0 : i32
    %c0_i32_0 = arith.constant 0 : i32
    return %c0_i32 : i32
  }
  func.func @transform_3(%arg0: i32, %arg1: i32) -> (i32, i32, i32) {
    %c0_i32 = arith.constant 0 : i32
    %c0_i32_0 = arith.constant 0 : i32
    %c0_i32_1 = arith.constant 0 : i32
    return %c0_i32, %arg1, %c0_i32_0 : i32, i32, i32
  }
  func.func @transform_4(%arg0: i32, %arg1: i32) -> (i32, i32, i32) {
    %c0_i32 = arith.constant 0 : i32
    %c0_i32_0 = arith.constant 0 : i32
    %c0_i32_1 = arith.constant 0 : i32
    return %c0_i32, %arg1, %c0_i32_0 : i32, i32, i32
  }
  func.func @transform_5(%arg0: i32, %arg1: i32) -> (i32, i32, i32) {
    %c0_i32 = arith.constant 0 : i32
    %c0_i32_0 = arith.constant 0 : i32
    %c0_i32_1 = arith.constant 0 : i32
    return %c0_i32, %arg0, %c0_i32_0 : i32, i32, i32
  }
  func.func @transform_6(%arg0: i32, %arg1: i32) -> (i32, i32, i32) {
    %c0_i32 = arith.constant 0 : i32
    %c0_i32_0 = arith.constant 0 : i32
    %c0_i32_1 = arith.constant 0 : i32
    return %c0_i32, %arg0, %c0_i32_0 : i32, i32, i32
  }
  func.func @transform_7(%arg0: i32, %arg1: i32) -> (i32, i32, i32) {
    %c0_i32 = arith.constant 0 : i32
    %c0_i32_0 = arith.constant 0 : i32
    %c0_i32_1 = arith.constant 0 : i32
    %c0_i32_2 = arith.constant 0 : i32
    return %c0_i32, %c0_i32_0, %c0_i32_1 : i32, i32, i32
  }
  func.func @transform_8(%arg0: i32, %arg1: i32) -> (i32, i32, i32) {
    %c0_i32 = arith.constant 0 : i32
    %c0_i32_0 = arith.constant 0 : i32
    %c0_i32_1 = arith.constant 0 : i32
    %c0_i32_2 = arith.constant 0 : i32
    return %c0_i32, %c0_i32_0, %c0_i32_1 : i32, i32, i32
  }
  func.func @transform_9(%arg0: i32, %arg1: i32) -> (i32, i32) {
    %c0_i32 = arith.constant 0 : i32
    return %arg1, %arg0 : i32, i32
  }
  func.func @transform_10(%arg0: i32, %arg1: i32) -> (i32, i32) {
    %c0_i32 = arith.constant 0 : i32
    %c0_i32_0 = arith.constant 0 : i32
    return %c0_i32, %arg0 : i32, i32
  }
}

</mosaic_0001>

<llo_original>
// kernel: tpu_custom_call.1
$region0: #{tpu_custom_call.1}
  #allocation0 [shape = 'u32[]', space=smem, size = 0x4, offset = 0x4, fixed_abs, tag = 'smem constant byte address 0x4 - core index']
  #allocation1 [shape = 'u32[144,128]{1,0:T(1,128)}', space=vmem, size = 0x12000, scoped, tag = 'internal scratch']
  %s0 = inlined_call_operand.vmem [shape: f32[2], index: 0, kind: input, shape index: {}]
  %s1 = inlined_call_operand.vmem [shape: f32[2], index: 1, kind: input, shape index: {}]
  %s2 = inlined_call_operand.vmem [shape: f32[2], index: 2, kind: input, shape index: {}]
  %s3 = inlined_call_operand.vmem [shape: f32[2,8,2], index: 3, kind: input, shape index: {}]
  %s4 = inlined_call_operand.vmem [shape: f32[2,8,3], index: 4, kind: input, shape index: {}]
  %s5 = inlined_call_operand.vmem [shape: f32[2,8,2], index: 5, kind: input, shape index: {}]
  %s6 = inlined_call_operand.vmem [shape: f32[2,8,3], index: 6, kind: input, shape index: {}]
  %s7 = inlined_call_operand.vmem [shape: f32[2,4,2], index: 7, kind: input, shape index: {}]
  %s8 = inlined_call_operand.vmem [shape: f32[2,8,3], index: 8, kind: input, shape index: {}]
  %s9 = inlined_call_operand.hbm [shape: f32[8,8], index: 9, kind: output, shape index: {0}]
  %s10 = inlined_call_operand.vmem [shape: f32[32,8], index: 10, kind: output, shape index: {1}]
  %11 = xla_tuple %s9, %s10
  %s12 = sld [smem:[#allocation0]]
  $region70: #{tpu_custom_call.1} parent=0
    _
  %s14 = ssub.s32 1, %s12
  %s15 = scalar_select 0, %s14, %s12
  $region1: #{tpu_custom_call.1} parent=0
    #allocation2 [shape = 'u8[512]{0}', space=smem, size = 0x200, scoped, tag = 'input window, operand 0, single buffered']
    #allocation3 [shape = 's32[1]{0}', space=sflag, size = 0x4, scoped, tag = 'scoped memory for tpu_custom_call.1']
    #allocation4 [shape = 's32[1]{0}', space=sflag, size = 0x4, scoped, tag = 'scoped memory for tpu_custom_call.1']
    #allocation5 [shape = 'u8[512]{0}', space=smem, size = 0x200, scoped, tag = 'input window, operand 1, single buffered']
    #allocation6 [shape = 's32[1]{0}', space=sflag, size = 0x4, scoped, tag = 'scoped memory for tpu_custom_call.1']
    #allocation7 [shape = 'u8[512]{0}', space=smem, size = 0x200, scoped, tag = 'input window, operand 2, single buffered']
    #allocation8 [shape = 'u8[4096]{0}', space=vmem, size = 0x1000, scoped, tag = 'output window, operand 0, single buffered']
    %16 = vsyncpa [#allocation4], 0
    %17 = vsyncpa [#allocation6], 0
    %18 = vsyncpa [#allocation3], 0
    // Predicated region
    $region2: #{tpu_custom_call.1} parent=1 // pred_check
      _
    $region3: #{tpu_custom_call.1} parent=1 // pred_check_branch
      %20 = sbr.rel (0) target = $region5
    $region4: #{tpu_custom_call.1} parent=1 // pred_region
      %s22 = ssub.s32 16, 16
      %23 = vsyncadd [#allocation4], %s22
      %s25 = sshll.u32 %s0, 4
      %s26 = int_to_ptr.vmem [resolvable:$true] %s25
      %28 = dma.vmem_to_smem %s26, 16, [#allocation2], [#allocation4]
    $region5: #{tpu_custom_call.1} parent=1 // pred_fallthru
      _
    // Predicated region
    $region6: #{tpu_custom_call.1} parent=1 // pred_check
      _
    $region7: #{tpu_custom_call.1} parent=1 // pred_check_branch
      %30 = sbr.rel (0) target = $region9
    $region8: #{tpu_custom_call.1} parent=1 // pred_region
      %s32 = ssub.s32 16, 16
      %33 = vsyncadd [#allocation6], %s32
      %s35 = sshll.u32 %s1, 4
      %s36 = int_to_ptr.vmem [resolvable:$true] %s35
      %38 = dma.vmem_to_smem %s36, 16, [#allocation5], [#allocation6]
    $region9: #{tpu_custom_call.1} parent=1 // pred_fallthru
      _
    // Predicated region
    $region10: #{tpu_custom_call.1} parent=1 // pred_check
      _
    $region11: #{tpu_custom_call.1} parent=1 // pred_check_branch
      %40 = sbr.rel (0) target = $region13
    $region12: #{tpu_custom_call.1} parent=1 // pred_region
      %s42 = ssub.s32 16, 16
      %43 = vsyncadd [#allocation6], %s42
      %s45 = sshll.u32 %s2, 4
      %s46 = int_to_ptr.vmem [resolvable:$true] %s45
      %48 = dma.vmem_to_smem %s46, 16, [#allocation7], [#allocation6]
    $region13: #{tpu_custom_call.1} parent=1 // pred_fallthru
      _
    // Predicated region
    $region14: #{tpu_custom_call.1} parent=1 // pred_check
      _
    $region15: #{tpu_custom_call.1} parent=1 // pred_check_branch
      %50 = sbr.rel (0) target = $region17
    $region16: #{tpu_custom_call.1} parent=1 // pred_region
      _
    $region17: #{tpu_custom_call.1} parent=1 // pred_fallthru
      _
    // Predicated region
    $region18: #{tpu_custom_call.1} parent=1 // pred_check
      _
    $region19: #{tpu_custom_call.1} parent=1 // pred_check_branch
      %52 = sbr.rel (0) target = $region21
    $region20: #{tpu_custom_call.1} parent=1 // pred_region
      _
    $region21: #{tpu_custom_call.1} parent=1 // pred_fallthru
      _
    // Predicated region
    $region22: #{tpu_custom_call.1} parent=1 // pred_check
      _
    $region23: #{tpu_custom_call.1} parent=1 // pred_check_branch
      %54 = sbr.rel (0) target = $region25
    $region24: #{tpu_custom_call.1} parent=1 // pred_region
      _
    $region25: #{tpu_custom_call.1} parent=1 // pred_fallthru
      _
    // Predicated region
    $region26: #{tpu_custom_call.1} parent=1 // pred_check
      _
    $region27: #{tpu_custom_call.1} parent=1 // pred_check_branch
      %56 = sbr.rel (0) target = $region29
    $region28: #{tpu_custom_call.1} parent=1 // pred_region
      _
    $region29: #{tpu_custom_call.1} parent=1 // pred_fallthru
      _
    // Predicated region
    $region30: #{tpu_custom_call.1} parent=1 // pred_check
      _
    $region31: #{tpu_custom_call.1} parent=1 // pred_check_branch
      %58 = sbr.rel (0) target = $region33
    $region32: #{tpu_custom_call.1} parent=1 // pred_region
      _
    $region33: #{tpu_custom_call.1} parent=1 // pred_fallthru
      _
    // Predicated region
    $region34: #{tpu_custom_call.1} parent=1 // pred_check
      _
    $region35: #{tpu_custom_call.1} parent=1 // pred_check_branch
      %60 = sbr.rel (0) target = $region37
    $region36: #{tpu_custom_call.1} parent=1 // pred_region
      _
    $region37: #{tpu_custom_call.1} parent=1 // pred_fallthru
      _
    // Predicated region
    $region38: #{tpu_custom_call.1} parent=1 // pred_check
      _
    $region39: #{tpu_custom_call.1} parent=1 // pred_check_branch
      %62 = sbr.rel (0) target = $region41
    $region40: #{tpu_custom_call.1} parent=1 // pred_region
      %63 = dma.done [#allocation4], 16
    $region41: #{tpu_custom_call.1} parent=1 // pred_fallthru
      _
    // Predicated region
    $region42: #{tpu_custom_call.1} parent=1 // pred_check
      _
    $region43: #{tpu_custom_call.1} parent=1 // pred_check_branch
      %65 = sbr.rel (0) target = $region45
    $region44: #{tpu_custom_call.1} parent=1 // pred_region
      %66 = dma.done [#allocation6], 16
    $region45: #{tpu_custom_call.1} parent=1 // pred_fallthru
      _
    // Predicated region
    $region46: #{tpu_custom_call.1} parent=1 // pred_check
      _
    $region47: #{tpu_custom_call.1} parent=1 // pred_check_branch
      %68 = sbr.rel (0) target = $region49
    $region48: #{tpu_custom_call.1} parent=1 // pred_region
      %69 = dma.done [#allocation6], 16
    $region49: #{tpu_custom_call.1} parent=1 // pred_fallthru
      _
    %70 = sfence
    %s71 = sld [smem:[#allocation5]]
    %s72 = sld [smem:[#allocation7]]
    %s73 = sld [smem:[#allocation2]]
    %v74 = vld [vmem:[%s3] sm:$0xff]
    %v75 = vstv %s71
    %v76 = vmul.f32 %v74, %v75
    %v77 = vld [vmem:[%s5] sm:$0xff]
    %v78 = vmul.f32 %v77, %v75
    %v79 = vmul.f32 %v76, %v76
    %vm80 = vcmask 15360
    %v81 = vsel %vm80, %v79, 0.0
    %82 = vadd.xlane.f32.xlu0 %v81
    %v83 = vpop.xlane.xlu0 %82
    %v84 = vmul.f32 %v78, %v78
    %v86 = vsel %vm80, 1.0, 0
    %v89 = vsel %vm80, %v84, 0
    %91 = vmatprep.subr.mxu0 0.0
    %92 = vmatpush1.xpose.msra.mxu0 0.0
    %93 = vmatprep.subr.mxu0 0.0
    %94 = vmatpush1.xpose.msra.mxu0 0.0
    %95 = vmatprep.subr.mxu0 0.0
    %96 = vmatpush1.xpose.msra.mxu0 0.0
    %97 = vmatprep.subr.mxu0 0.0
    %98 = vmatpush1.xpose.msra.mxu0 0.0
    %99 = vmatprep.subr.mxu0 0.0
    %100 = vmatpush1.xpose.msra.mxu0 0.0
    %101 = vmatprep.subr.mxu0 0.0
    %102 = vmatpush1.xpose.msra.mxu0 0.0
    %103 = vmatprep.subr.mxu0 0.0
    %104 = vmatpush1.xpose.msra.mxu0 0.0
    %105 = vmatprep.subr.mxu0 0.0
    %106 = vmatpush1.xpose.msra.mxu0 0.0
    %107 = vmatprep.subr.mxu0 0.0
    %108 = vmatpush1.xpose.msra.mxu0 0.0
    %109 = vmatprep.subr.mxu0 0.0
    %110 = vmatpush1.xpose.msra.mxu0 0.0
    %111 = vmatprep.subr.mxu0 0.0
    %112 = vmatpush1.xpose.msra.mxu0 0.0
    %113 = vmatprep.subr.mxu0 0.0
    %114 = vmatpush1.xpose.msra.mxu0 0.0
    %115 = vmatprep.subr.mxu0 0.0
    %116 = vmatpush1.xpose.msra.mxu0 0.0
    %117 = vmatprep.subr.mxu0 0.0
    %118 = vmatpush1.xpose.msra.mxu0 0.0
    %119 = vmatprep.subr.mxu0 0.0
    %120 = vmatpush1.xpose.msra.mxu0 0.0
    %121 = vmatprep.subr.mxu0 0.0
    %122 = vmatpush1.xpose.msra.mxu0 %v89
    %123 = vmatprep.subr.mxu0 0.0
    %124 = vmatpush2.xpose.msra.mxu0 0.0
    %125 = vmatprep.subr.mxu0 0.0
    %126 = vmatpush2.xpose.msra.mxu0 0.0
    %127 = vmatprep.subr.mxu0 0.0
    %128 = vmatpush2.xpose.msra.mxu0 0.0
    %129 = vmatprep.subr.mxu0 0.0
    %130 = vmatpush2.xpose.msra.mxu0 0.0
    %131 = vmatprep.subr.mxu0 0.0
    %132 = vmatpush2.xpose.msra.mxu0 0.0
    %133 = vmatprep.subr.mxu0 0.0
    %134 = vmatpush2.xpose.msra.mxu0 0.0
    %135 = vmatprep.subr.mxu0 0.0
    %136 = vmatpush2.xpose.msra.mxu0 0.0
    %137 = vmatprep.subr.mxu0 0.0
    %138 = vmatpush2.xpose.msra.mxu0 0.0
    %139 = vmatprep.subr.mxu0 0.0
    %140 = vmatpush2.xpose.msra.mxu0 0.0
    %141 = vmatprep.subr.mxu0 0.0
    %142 = vmatpush2.xpose.msra.mxu0 0.0
    %143 = vmatprep.subr.mxu0 0.0
    %144 = vmatpush2.xpose.msra.mxu0 0.0
    %145 = vmatprep.subr.mxu0 0.0
    %146 = vmatpush2.xpose.msra.mxu0 0.0
    %147 = vmatprep.subr.mxu0 0.0
    %148 = vmatpush2.xpose.msra.mxu0 0.0
    %149 = vmatprep.subr.mxu0 0.0
    %150 = vmatpush2.xpose.msra.mxu0 0.0
    %151 = vmatprep.subr.mxu0 0.0
    %152 = vmatpush2.xpose.msra.mxu0 0.0
    %153 = vmatprep.subr.mxu0 0.0
    %154 = vmatpush2.xpose.msra.mxu0 0.0
    %155 = vmatprep.mubr.f32.mxu0 0.0
    %156 = vmatmul.mubr.f32.gmra.mxu0 %v86
    %v157 = vpop.f32.mrf.mxu0
    %v158 = vadd.f32 0.0, %v157
    %v159 = vpop.f32.mrf.mxu0
    %160 = vdwg.mxu0
    %v162 = vsel %vm80, %v76, 0
    %v165 = vsel %vm80, %v78, 0
    %167 = vmatprep.subr.mxu0 0.0
    %168 = vmatpush1.xpose.msra.mxu0 0.0
    %169 = vmatprep.subr.mxu0 0.0
    %170 = vmatpush1.xpose.msra.mxu0 0.0
    %171 = vmatprep.subr.mxu0 0.0
    %172 = vmatpush1.xpose.msra.mxu0 0.0
    %173 = vmatprep.subr.mxu0 0.0
    %174 = vmatpush1.xpose.msra.mxu0 0.0
    %175 = vmatprep.subr.mxu0 0.0
    %176 = vmatpush1.xpose.msra.mxu0 0.0
    %177 = vmatprep.subr.mxu0 0.0
    %178 = vmatpush1.xpose.msra.mxu0 0.0
    %179 = vmatprep.subr.mxu0 0.0
    %180 = vmatpush1.xpose.msra.mxu0 0.0
    %181 = vmatprep.subr.mxu0 0.0
    %182 = vmatpush1.xpose.msra.mxu0 0.0
    %183 = vmatprep.subr.mxu0 0.0
    %184 = vmatpush1.xpose.msra.mxu0 0.0
    %185 = vmatprep.subr.mxu0 0.0
    %186 = vmatpush1.xpose.msra.mxu0 0.0
    %187 = vmatprep.subr.mxu0 0.0
    %188 = vmatpush1.xpose.msra.mxu0 0.0
    %189 = vmatprep.subr.mxu0 0.0
    %190 = vmatpush1.xpose.msra.mxu0 0.0
    %191 = vmatprep.subr.mxu0 0.0
    %192 = vmatpush1.xpose.msra.mxu0 0.0
    %193 = vmatprep.subr.mxu0 0.0
    %194 = vmatpush1.xpose.msra.mxu0 0.0
    %195 = vmatprep.subr.mxu0 0.0
    %196 = vmatpush1.xpose.msra.mxu0 0.0
    %197 = vmatprep.subr.mxu0 0.0
    %198 = vmatpush1.xpose.msra.mxu0 %v165
    %199 = vmatprep.subr.mxu0 0.0
    %200 = vmatpush2.xpose.msra.mxu0 0.0
    %201 = vmatprep.subr.mxu0 0.0
    %202 = vmatpush2.xpose.msra.mxu0 0.0
    %203 = vmatprep.subr.mxu0 0.0
    %204 = vmatpush2.xpose.msra.mxu0 0.0
    %205 = vmatprep.subr.mxu0 0.0
    %206 = vmatpush2.xpose.msra.mxu0 0.0
    %207 = vmatprep.subr.mxu0 0.0
    %208 = vmatpush2.xpose.msra.mxu0 0.0
    %209 = vmatprep.subr.mxu0 0.0
    %210 = vmatpush2.xpose.msra.mxu0 0.0
    %211 = vmatprep.subr.mxu0 0.0
    %212 = vmatpush2.xpose.msra.mxu0 0.0
    %213 = vmatprep.subr.mxu0 0.0
    %214 = vmatpush2.xpose.msra.mxu0 0.0
    %215 = vmatprep.subr.mxu0 0.0
    %216 = vmatpush2.xpose.msra.mxu0 0.0
    %217 = vmatprep.subr.mxu0 0.0
    %218 = vmatpush2.xpose.msra.mxu0 0.0
    %219 = vmatprep.subr.mxu0 0.0
    %220 = vmatpush2.xpose.msra.mxu0 0.0
    %221 = vmatprep.subr.mxu0 0.0
    %222 = vmatpush2.xpose.msra.mxu0 0.0
    %223 = vmatprep.subr.mxu0 0.0
    %224 = vmatpush2.xpose.msra.mxu0 0.0
    %225 = vmatprep.subr.mxu0 0.0
    %226 = vmatpush2.xpose.msra.mxu0 0.0
    %227 = vmatprep.subr.mxu0 0.0
    %228 = vmatpush2.xpose.msra.mxu0 0.0
    %229 = vmatprep.subr.mxu0 0.0
    %230 = vmatpush2.xpose.msra.mxu0 0.0
    %231 = vmatprep.mubr.f32.mxu0 0.0
    %232 = vmatmul.mubr.f32.gmra.mxu0 %v162
    %v233 = vpop.f32.mrf.mxu0
    %v234 = vadd.f32 0.0, %v233
    %v235 = vpop.f32.mrf.mxu0
    %236 = vdwg.mxu0
    %v237 = vlaneseq
    %v238 = vshrl.u32 %v237, 7
    %v239 = vsub.s32 0, %v238
    %v240 = vrot.slane %v158, %v239
    %v241 = vadd.f32 %v83, %v240
    %v242 = vmul.f32 %v234, 2.0
    %v243 = vsub.f32 %v241, %v242
    %v244 = vmax.f32 %v243, 0.0
    %v245 = vld [vmem:[%s4] sm:$0xff]
    %v246 = vstv %s72
    %v247 = vmul.f32 %v245, %v246
    %v248 = vld [vmem:[%s6] sm:$0xff]
    %v249 = vmul.f32 %v248, %v246
    %v250 = vmul.f32 %v247, %v247
    %vm251 = vcmask 23552
    %v252 = vsel %vm251, %v250, 0.0
    %253 = vadd.xlane.f32.xlu0 %v252
    %v254 = vpop.xlane.xlu0 %253
    %v255 = vmul.f32 %v249, %v249
    %v256 = vsel %vm251, 1.0, 0
    %v259 = vsel %vm251, %v255, 0
    %261 = vmatprep.subr.mxu0 0.0
    %262 = vmatpush1.xpose.msra.mxu0 0.0
    %263 = vmatprep.subr.mxu0 0.0
    %264 = vmatpush1.xpose.msra.mxu0 0.0
    %265 = vmatprep.subr.mxu0 0.0
    %266 = vmatpush1.xpose.msra.mxu0 0.0
    %267 = vmatprep.subr.mxu0 0.0
    %268 = vmatpush1.xpose.msra.mxu0 0.0
    %269 = vmatprep.subr.mxu0 0.0
    %270 = vmatpush1.xpose.msra.mxu0 0.0
    %271 = vmatprep.subr.mxu0 0.0
    %272 = vmatpush1.xpose.msra.mxu0 0.0
    %273 = vmatprep.subr.mxu0 0.0
    %274 = vmatpush1.xpose.msra.mxu0 0.0
    %275 = vmatprep.subr.mxu0 0.0
    %276 = vmatpush1.xpose.msra.mxu0 0.0
    %277 = vmatprep.subr.mxu0 0.0
    %278 = vmatpush1.xpose.msra.mxu0 0.0
    %279 = vmatprep.subr.mxu0 0.0
    %280 = vmatpush1.xpose.msra.mxu0 0.0
    %281 = vmatprep.subr.mxu0 0.0
    %282 = vmatpush1.xpose.msra.mxu0 0.0
    %283 = vmatprep.subr.mxu0 0.0
    %284 = vmatpush1.xpose.msra.mxu0 0.0
    %285 = vmatprep.subr.mxu0 0.0
    %286 = vmatpush1.xpose.msra.mxu0 0.0
    %287 = vmatprep.subr.mxu0 0.0
    %288 = vmatpush1.xpose.msra.mxu0 0.0
    %289 = vmatprep.subr.mxu0 0.0
    %290 = vmatpush1.xpose.msra.mxu0 0.0
    %291 = vmatprep.subr.mxu0 0.0
    %292 = vmatpush1.xpose.msra.mxu0 %v259
    %293 = vmatprep.subr.mxu0 0.0
    %294 = vmatpush2.xpose.msra.mxu0 0.0
    %295 = vmatprep.subr.mxu0 0.0
    %296 = vmatpush2.xpose.msra.mxu0 0.0
    %297 = vmatprep.subr.mxu0 0.0
    %298 = vmatpush2.xpose.msra.mxu0 0.0
    %299 = vmatprep.subr.mxu0 0.0
    %300 = vmatpush2.xpose.msra.mxu0 0.0
    %301 = vmatprep.subr.mxu0 0.0
    %302 = vmatpush2.xpose.msra.mxu0 0.0
    %303 = vmatprep.subr.mxu0 0.0
    %304 = vmatpush2.xpose.msra.mxu0 0.0
    %305 = vmatprep.subr.mxu0 0.0
    %306 = vmatpush2.xpose.msra.mxu0 0.0
    %307 = vmatprep.subr.mxu0 0.0
    %308 = vmatpush2.xpose.msra.mxu0 0.0
    %309 = vmatprep.subr.mxu0 0.0
    %310 = vmatpush2.xpose.msra.mxu0 0.0
    %311 = vmatprep.subr.mxu0 0.0
    %312 = vmatpush2.xpose.msra.mxu0 0.0
    %313 = vmatprep.subr.mxu0 0.0
    %314 = vmatpush2.xpose.msra.mxu0 0.0
    %315 = vmatprep.subr.mxu0 0.0
    %316 = vmatpush2.xpose.msra.mxu0 0.0
    %317 = vmatprep.subr.mxu0 0.0
    %318 = vmatpush2.xpose.msra.mxu0 0.0
    %319 = vmatprep.subr.mxu0 0.0
    %320 = vmatpush2.xpose.msra.mxu0 0.0
    %321 = vmatprep.subr.mxu0 0.0
    %322 = vmatpush2.xpose.msra.mxu0 0.0
    %323 = vmatprep.subr.mxu0 0.0
    %324 = vmatpush2.xpose.msra.mxu0 0.0
    %325 = vmatprep.mubr.f32.mxu0 0.0
    %326 = vmatmul.mubr.f32.gmra.mxu0 %v256
    %v327 = vpop.f32.mrf.mxu0
    %v328 = vadd.f32 0.0, %v327
    %v329 = vpop.f32.mrf.mxu0
    %330 = vdwg.mxu0
    %v332 = vsel %vm251, %v247, 0
    %v335 = vsel %vm251, %v249, 0
    %337 = vmatprep.subr.mxu0 0.0
    %338 = vmatpush1.xpose.msra.mxu0 0.0
    %339 = vmatprep.subr.mxu0 0.0
    %340 = vmatpush1.xpose.msra.mxu0 0.0
    %341 = vmatprep.subr.mxu0 0.0
    %342 = vmatpush1.xpose.msra.mxu0 0.0
    %343 = vmatprep.subr.mxu0 0.0
    %344 = vmatpush1.xpose.msra.mxu0 0.0
    %345 = vmatprep.subr.mxu0 0.0
    %346 = vmatpush1.xpose.msra.mxu0 0.0
    %347 = vmatprep.subr.mxu0 0.0
    %348 = vmatpush1.xpose.msra.mxu0 0.0
    %349 = vmatprep.subr.mxu0 0.0
    %350 = vmatpush1.xpose.msra.mxu0 0.0
    %351 = vmatprep.subr.mxu0 0.0
    %352 = vmatpush1.xpose.msra.mxu0 0.0
    %353 = vmatprep.subr.mxu0 0.0
    %354 = vmatpush1.xpose.msra.mxu0 0.0
    %355 = vmatprep.subr.mxu0 0.0
    %356 = vmatpush1.xpose.msra.mxu0 0.0
    %357 = vmatprep.subr.mxu0 0.0
    %358 = vmatpush1.xpose.msra.mxu0 0.0
    %359 = vmatprep.subr.mxu0 0.0
    %360 = vmatpush1.xpose.msra.mxu0 0.0
    %361 = vmatprep.subr.mxu0 0.0
    %362 = vmatpush1.xpose.msra.mxu0 0.0
    %363 = vmatprep.subr.mxu0 0.0
    %364 = vmatpush1.xpose.msra.mxu0 0.0
    %365 = vmatprep.subr.mxu0 0.0
    %366 = vmatpush1.xpose.msra.mxu0 0.0
    %367 = vmatprep.subr.mxu0 0.0
    %368 = vmatpush1.xpose.msra.mxu0 %v335
    %369 = vmatprep.subr.mxu0 0.0
    %370 = vmatpush2.xpose.msra.mxu0 0.0
    %371 = vmatprep.subr.mxu0 0.0
    %372 = vmatpush2.xpose.msra.mxu0 0.0
    %373 = vmatprep.subr.mxu0 0.0
    %374 = vmatpush2.xpose.msra.mxu0 0.0
    %375 = vmatprep.subr.mxu0 0.0
    %376 = vmatpush2.xpose.msra.mxu0 0.0
    %377 = vmatprep.subr.mxu0 0.0
    %378 = vmatpush2.xpose.msra.mxu0 0.0
    %379 = vmatprep.subr.mxu0 0.0
    %380 = vmatpush2.xpose.msra.mxu0 0.0
    %381 = vmatprep.subr.mxu0 0.0
    %382 = vmatpush2.xpose.msra.mxu0 0.0
    %383 = vmatprep.subr.mxu0 0.0
    %384 = vmatpush2.xpose.msra.mxu0 0.0
    %385 = vmatprep.subr.mxu0 0.0
    %386 = vmatpush2.xpose.msra.mxu0 0.0
    %387 = vmatprep.subr.mxu0 0.0
    %388 = vmatpush2.xpose.msra.mxu0 0.0
    %389 = vmatprep.subr.mxu0 0.0
    %390 = vmatpush2.xpose.msra.mxu0 0.0
    %391 = vmatprep.subr.mxu0 0.0
    %392 = vmatpush2.xpose.msra.mxu0 0.0
    %393 = vmatprep.subr.mxu0 0.0
    %394 = vmatpush2.xpose.msra.mxu0 0.0
    %395 = vmatprep.subr.mxu0 0.0
    %396 = vmatpush2.xpose.msra.mxu0 0.0
    %397 = vmatprep.subr.mxu0 0.0
    %398 = vmatpush2.xpose.msra.mxu0 0.0
    %399 = vmatprep.subr.mxu0 0.0
    %400 = vmatpush2.xpose.msra.mxu0 0.0
    %401 = vmatprep.mubr.f32.mxu0 0.0
    %402 = vmatmul.mubr.f32.gmra.mxu0 %v332
    %v403 = vpop.f32.mrf.mxu0
    %v404 = vadd.f32 0.0, %v403
    %v405 = vpop.f32.mrf.mxu0
    %406 = vdwg.mxu0
    %v407 = vlaneseq
    %v408 = vshrl.u32 %v407, 7
    %v409 = vsub.s32 0, %v408
    %v410 = vrot.slane %v328, %v409
    %v411 = vadd.f32 %v254, %v410
    %v412 = vmul.f32 %v404, 2.0
    %v413 = vsub.f32 %v411, %v412
    %v414 = vmax.f32 %v413, 0.0
    %v415 = vadd.f32 %v244, %v414
    %v416 = vsub.f32 0.0, %v415
    %v417 = vmul.f32 %v416, 1.442695
    %v418 = vpow.pop %v417
    %v419 = vstv %s73
    %v420 = vmul.f32 %v419, %v418
    %v421 = vadd.f32 %v420, 0.0
    %s422 = sld [smem:[#allocation5 + $0x1]]
    %s423 = sld [smem:[#allocation7 + $0x1]]
    %s424 = sld [smem:[#allocation2 + $0x1]]
    %s425 = scalar_lea.vmem %s3, 8
    %v426 = vld [vmem:[%s425] sm:$0xff]
    %v427 = vstv %s422
    %v428 = vmul.f32 %v426, %v427
    %s429 = scalar_lea.vmem %s5, 8
    %v430 = vld [vmem:[%s429] sm:$0xff]
    %v431 = vmul.f32 %v430, %v427
    %v432 = vmul.f32 %v428, %v428
    %v433 = vsel %vm80, %v432, 0.0
    %434 = vadd.xlane.f32.xlu0 %v433
    %v435 = vpop.xlane.xlu0 %434
    %v436 = vmul.f32 %v431, %v431
    %v438 = vsel %vm80, %v436, 0
    %440 = vmatprep.subr.mxu0 0.0
    %441 = vmatpush1.xpose.msra.mxu0 0.0
    %442 = vmatprep.subr.mxu0 0.0
    %443 = vmatpush1.xpose.msra.mxu0 0.0
    %444 = vmatprep.subr.mxu0 0.0
    %445 = vmatpush1.xpose.msra.mxu0 0.0
    %446 = vmatprep.subr.mxu0 0.0
    %447 = vmatpush1.xpose.msra.mxu0 0.0
    %448 = vmatprep.subr.mxu0 0.0
    %449 = vmatpush1.xpose.msra.mxu0 0.0
    %450 = vmatprep.subr.mxu0 0.0
    %451 = vmatpush1.xpose.msra.mxu0 0.0
    %452 = vmatprep.subr.mxu0 0.0
    %453 = vmatpush1.xpose.msra.mxu0 0.0
    %454 = vmatprep.subr.mxu0 0.0
    %455 = vmatpush1.xpose.msra.mxu0 0.0
    %456 = vmatprep.subr.mxu0 0.0
    %457 = vmatpush1.xpose.msra.mxu0 0.0
    %458 = vmatprep.subr.mxu0 0.0
    %459 = vmatpush1.xpose.msra.mxu0 0.0
    %460 = vmatprep.subr.mxu0 0.0
    %461 = vmatpush1.xpose.msra.mxu0 0.0
    %462 = vmatprep.subr.mxu0 0.0
    %463 = vmatpush1.xpose.msra.mxu0 0.0
    %464 = vmatprep.subr.mxu0 0.0
    %465 = vmatpush1.xpose.msra.mxu0 0.0
    %466 = vmatprep.subr.mxu0 0.0
    %467 = vmatpush1.xpose.msra.mxu0 0.0
    %468 = vmatprep.subr.mxu0 0.0
    %469 = vmatpush1.xpose.msra.mxu0 0.0
    %470 = vmatprep.subr.mxu0 0.0
    %471 = vmatpush1.xpose.msra.mxu0 %v438
    %472 = vmatprep.subr.mxu0 0.0
    %473 = vmatpush2.xpose.msra.mxu0 0.0
    %474 = vmatprep.subr.mxu0 0.0
    %475 = vmatpush2.xpose.msra.mxu0 0.0
    %476 = vmatprep.subr.mxu0 0.0
    %477 = vmatpush2.xpose.msra.mxu0 0.0
    %478 = vmatprep.subr.mxu0 0.0
    %479 = vmatpush2.xpose.msra.mxu0 0.0
    %480 = vmatprep.subr.mxu0 0.0
    %481 = vmatpush2.xpose.msra.mxu0 0.0
    %482 = vmatprep.subr.mxu0 0.0
    %483 = vmatpush2.xpose.msra.mxu0 0.0
    %484 = vmatprep.subr.mxu0 0.0
    %485 = vmatpush2.xpose.msra.mxu0 0.0
    %486 = vmatprep.subr.mxu0 0.0
    %487 = vmatpush2.xpose.msra.mxu0 0.0
    %488 = vmatprep.subr.mxu0 0.0
    %489 = vmatpush2.xpose.msra.mxu0 0.0
    %490 = vmatprep.subr.mxu0 0.0
    %491 = vmatpush2.xpose.msra.mxu0 0.0
    %492 = vmatprep.subr.mxu0 0.0
    %493 = vmatpush2.xpose.msra.mxu0 0.0
    %494 = vmatprep.subr.mxu0 0.0
    %495 = vmatpush2.xpose.msra.mxu0 0.0
    %496 = vmatprep.subr.mxu0 0.0
    %497 = vmatpush2.xpose.msra.mxu0 0.0
    %498 = vmatprep.subr.mxu0 0.0
    %499 = vmatpush2.xpose.msra.mxu0 0.0
    %500 = vmatprep.subr.mxu0 0.0
    %501 = vmatpush2.xpose.msra.mxu0 0.0
    %502 = vmatprep.subr.mxu0 0.0
    %503 = vmatpush2.xpose.msra.mxu0 0.0
    %504 = vmatprep.mubr.f32.mxu0 0.0
    %505 = vmatmul.mubr.f32.gmra.mxu0 %v86
    %v506 = vpop.f32.mrf.mxu0
    %v507 = vadd.f32 0.0, %v506
    %v508 = vpop.f32.mrf.mxu0
    %509 = vdwg.mxu0
    %v511 = vsel %vm80, %v428, 0
    %v514 = vsel %vm80, %v431, 0
    %516 = vmatprep.subr.mxu0 0.0
    %517 = vmatpush1.xpose.msra.mxu0 0.0
    %518 = vmatprep.subr.mxu0 0.0
    %519 = vmatpush1.xpose.msra.mxu0 0.0
    %520 = vmatprep.subr.mxu0 0.0
    %521 = vmatpush1.xpose.msra.mxu0 0.0
    %522 = vmatprep.subr.mxu0 0.0
    %523 = vmatpush1.xpose.msra.mxu0 0.0
    %524 = vmatprep.subr.mxu0 0.0
    %525 = vmatpush1.xpose.msra.mxu0 0.0
    %526 = vmatprep.subr.mxu0 0.0
    %527 = vmatpush1.xpose.msra.mxu0 0.0
    %528 = vmatprep.subr.mxu0 0.0
    %529 = vmatpush1.xpose.msra.mxu0 0.0
    %530 = vmatprep.subr.mxu0 0.0
    %531 = vmatpush1.xpose.msra.mxu0 0.0
    %532 = vmatprep.subr.mxu0 0.0
    %533 = vmatpush1.xpose.msra.mxu0 0.0
    %534 = vmatprep.subr.mxu0 0.0
    %535 = vmatpush1.xpose.msra.mxu0 0.0
    %536 = vmatprep.subr.mxu0 0.0
    %537 = vmatpush1.xpose.msra.mxu0 0.0
    %538 = vmatprep.subr.mxu0 0.0
    %539 = vmatpush1.xpose.msra.mxu0 0.0
    %540 = vmatprep.subr.mxu0 0.0
    %541 = vmatpush1.xpose.msra.mxu0 0.0
    %542 = vmatprep.subr.mxu0 0.0
    %543 = vmatpush1.xpose.msra.mxu0 0.0
    %544 = vmatprep.subr.mxu0 0.0
    %545 = vmatpush1.xpose.msra.mxu0 0.0
    %546 = vmatprep.subr.mxu0 0.0
    %547 = vmatpush1.xpose.msra.mxu0 %v514
    %548 = vmatprep.subr.mxu0 0.0
    %549 = vmatpush2.xpose.msra.mxu0 0.0
    %550 = vmatprep.subr.mxu0 0.0
    %551 = vmatpush2.xpose.msra.mxu0 0.0
    %552 = vmatprep.subr.mxu0 0.0
    %553 = vmatpush2.xpose.msra.mxu0 0.0
    %554 = vmatprep.subr.mxu0 0.0
    %555 = vmatpush2.xpose.msra.mxu0 0.0
    %556 = vmatprep.subr.mxu0 0.0
    %557 = vmatpush2.xpose.msra.mxu0 0.0
    %558 = vmatprep.subr.mxu0 0.0
    %559 = vmatpush2.xpose.msra.mxu0 0.0
    %560 = vmatprep.subr.mxu0 0.0
    %561 = vmatpush2.xpose.msra.mxu0 0.0
    %562 = vmatprep.subr.mxu0 0.0
    %563 = vmatpush2.xpose.msra.mxu0 0.0
    %564 = vmatprep.subr.mxu0 0.0
    %565 = vmatpush2.xpose.msra.mxu0 0.0
    %566 = vmatprep.subr.mxu0 0.0
    %567 = vmatpush2.xpose.msra.mxu0 0.0
    %568 = vmatprep.subr.mxu0 0.0
    %569 = vmatpush2.xpose.msra.mxu0 0.0
    %570 = vmatprep.subr.mxu0 0.0
    %571 = vmatpush2.xpose.msra.mxu0 0.0
    %572 = vmatprep.subr.mxu0 0.0
    %573 = vmatpush2.xpose.msra.mxu0 0.0
    %574 = vmatprep.subr.mxu0 0.0
    %575 = vmatpush2.xpose.msra.mxu0 0.0
    %576 = vmatprep.subr.mxu0 0.0
    %577 = vmatpush2.xpose.msra.mxu0 0.0
    %578 = vmatprep.subr.mxu0 0.0
    %579 = vmatpush2.xpose.msra.mxu0 0.0
    %580 = vmatprep.mubr.f32.mxu0 0.0
    %581 = vmatmul.mubr.f32.gmra.mxu0 %v511
    %v582 = vpop.f32.mrf.mxu0
    %v583 = vadd.f32 0.0, %v582
    %v584 = vpop.f32.mrf.mxu0
    %585 = vdwg.mxu0
    %v586 = vlaneseq
    %v587 = vshrl.u32 %v586, 7
    %v588 = vsub.s32 0, %v587
    %v589 = vrot.slane %v507, %v588
    %v590 = vadd.f32 %v435, %v589
    %v591 = vmul.f32 %v583, 2.0
    %v592 = vsub.f32 %v590, %v591
    %v593 = vmax.f32 %v592, 0.0
    %s594 = scalar_lea.vmem %s4, 8
    %v595 = vld [vmem:[%s594] sm:$0xff]
    %v596 = vstv %s423
    %v597 = vmul.f32 %v595, %v596
    %s598 = scalar_lea.vmem %s6, 8
    %v599 = vld [vmem:[%s598] sm:$0xff]
    %v600 = vmul.f32 %v599, %v596
    %v601 = vmul.f32 %v597, %v597
    %v602 = vsel %vm251, %v601, 0.0
    %603 = vadd.xlane.f32.xlu0 %v602
    %v604 = vpop.xlane.xlu0 %603
    %v605 = vmul.f32 %v600, %v600
    %v607 = vsel %vm251, %v605, 0
    %609 = vmatprep.subr.mxu0 0.0
    %610 = vmatpush1.xpose.msra.mxu0 0.0
    %611 = vmatprep.subr.mxu0 0.0
    %612 = vmatpush1.xpose.msra.mxu0 0.0
    %613 = vmatprep.subr.mxu0 0.0
    %614 = vmatpush1.xpose.msra.mxu0 0.0
    %615 = vmatprep.subr.mxu0 0.0
    %616 = vmatpush1.xpose.msra.mxu0 0.0
    %617 = vmatprep.subr.mxu0 0.0
    %618 = vmatpush1.xpose.msra.mxu0 0.0
    %619 = vmatprep.subr.mxu0 0.0
    %620 = vmatpush1.xpose.msra.mxu0 0.0
    %621 = vmatprep.subr.mxu0 0.0
    %622 = vmatpush1.xpose.msra.mxu0 0.0
    %623 = vmatprep.subr.mxu0 0.0
    %624 = vmatpush1.xpose.msra.mxu0 0.0
    %625 = vmatprep.subr.mxu0 0.0
    %626 = vmatpush1.xpose.msra.mxu0 0.0
    %627 = vmatprep.subr.mxu0 0.0
    %628 = vmatpush1.xpose.msra.mxu0 0.0
    %629 = vmatprep.subr.mxu0 0.0
    %630 = vmatpush1.xpose.msra.mxu0 0.0
    %631 = vmatprep.subr.mxu0 0.0
    %632 = vmatpush1.xpose.msra.mxu0 0.0
    %633 = vmatprep.subr.mxu0 0.0
    %634 = vmatpush1.xpose.msra.mxu0 0.0
    %635 = vmatprep.subr.mxu0 0.0
    %636 = vmatpush1.xpose.msra.mxu0 0.0
    %637 = vmatprep.subr.mxu0 0.0
    %638 = vmatpush1.xpose.msra.mxu0 0.0
    %639 = vmatprep.subr.mxu0 0.0
    %640 = vmatpush1.xpose.msra.mxu0 %v607
    %641 = vmatprep.subr.mxu0 0.0
    %642 = vmatpush2.xpose.msra.mxu0 0.0
    %643 = vmatprep.subr.mxu0 0.0
    %644 = vmatpush2.xpose.msra.mxu0 0.0
    %645 = vmatprep.subr.mxu0 0.0
    %646 = vmatpush2.xpose.msra.mxu0 0.0
    %647 = vmatprep.subr.mxu0 0.0
    %648 = vmatpush2.xpose.msra.mxu0 0.0
    %649 = vmatprep.subr.mxu0 0.0
    %650 = vmatpush2.xpose.msra.mxu0 0.0
    %651 = vmatprep.subr.mxu0 0.0
    %652 = vmatpush2.xpose.msra.mxu0 0.0
    %653 = vmatprep.subr.mxu0 0.0
    %654 = vmatpush2.xpose.msra.mxu0 0.0
    %655 = vmatprep.subr.mxu0 0.0
    %656 = vmatpush2.xpose.msra.mxu0 0.0
    %657 = vmatprep.subr.mxu0 0.0
    %658 = vmatpush2.xpose.msra.mxu0 0.0
    %659 = vmatprep.subr.mxu0 0.0
    %660 = vmatpush2.xpose.msra.mxu0 0.0
    %661 = vmatprep.subr.mxu0 0.0
    %662 = vmatpush2.xpose.msra.mxu0 0.0
    %663 = vmatprep.subr.mxu0 0.0
    %664 = vmatpush2.xpose.msra.mxu0 0.0
    %665 = vmatprep.subr.mxu0 0.0
    %666 = vmatpush2.xpose.msra.mxu0 0.0
    %667 = vmatprep.subr.mxu0 0.0
    %668 = vmatpush2.xpose.msra.mxu0 0.0
    %669 = vmatprep.subr.mxu0 0.0
    %670 = vmatpush2.xpose.msra.mxu0 0.0
    %671 = vmatprep.subr.mxu0 0.0
    %672 = vmatpush2.xpose.msra.mxu0 0.0
    %673 = vmatprep.mubr.f32.mxu0 0.0
    %674 = vmatmul.mubr.f32.gmra.mxu0 %v256
    %v675 = vpop.f32.mrf.mxu0
    %v676 = vadd.f32 0.0, %v675
    %v677 = vpop.f32.mrf.mxu0
    %678 = vdwg.mxu0
    %v680 = vsel %vm251, %v597, 0
    %v683 = vsel %vm251, %v600, 0
    %685 = vmatprep.subr.mxu0 0.0
    %686 = vmatpush1.xpose.msra.mxu0 0.0
    %687 = vmatprep.subr.mxu0 0.0
    %688 = vmatpush1.xpose.msra.mxu0 0.0
    %689 = vmatprep.subr.mxu0 0.0
    %690 = vmatpush1.xpose.msra.mxu0 0.0
    %691 = vmatprep.subr.mxu0 0.0
    %692 = vmatpush1.xpose.msra.mxu0 0.0
    %693 = vmatprep.subr.mxu0 0.0
    %694 = vmatpush1.xpose.msra.mxu0 0.0
    %695 = vmatprep.subr.mxu0 0.0
    %696 = vmatpush1.xpose.msra.mxu0 0.0
    %697 = vmatprep.subr.mxu0 0.0
    %698 = vmatpush1.xpose.msra.mxu0 0.0
    %699 = vmatprep.subr.mxu0 0.0
    %700 = vmatpush1.xpose.msra.mxu0 0.0
    %701 = vmatprep.subr.mxu0 0.0
    %702 = vmatpush1.xpose.msra.mxu0 0.0
    %703 = vmatprep.subr.mxu0 0.0
    %704 = vmatpush1.xpose.msra.mxu0 0.0
    %705 = vmatprep.subr.mxu0 0.0
    %706 = vmatpush1.xpose.msra.mxu0 0.0
    %707 = vmatprep.subr.mxu0 0.0
    %708 = vmatpush1.xpose.msra.mxu0 0.0
    %709 = vmatprep.subr.mxu0 0.0
    %710 = vmatpush1.xpose.msra.mxu0 0.0
    %711 = vmatprep.subr.mxu0 0.0
    %712 = vmatpush1.xpose.msra.mxu0 0.0
    %713 = vmatprep.subr.mxu0 0.0
    %714 = vmatpush1.xpose.msra.mxu0 0.0
    %715 = vmatprep.subr.mxu0 0.0
    %716 = vmatpush1.xpose.msra.mxu0 %v683
    %717 = vmatprep.subr.mxu0 0.0
    %718 = vmatpush2.xpose.msra.mxu0 0.0
    %719 = vmatprep.subr.mxu0 0.0
    %720 = vmatpush2.xpose.msra.mxu0 0.0
    %721 = vmatprep.subr.mxu0 0.0
    %722 = vmatpush2.xpose.msra.mxu0 0.0
    %723 = vmatprep.subr.mxu0 0.0
    %724 = vmatpush2.xpose.msra.mxu0 0.0
    %725 = vmatprep.subr.mxu0 0.0
    %726 = vmatpush2.xpose.msra.mxu0 0.0
    %727 = vmatprep.subr.mxu0 0.0
    %728 = vmatpush2.xpose.msra.mxu0 0.0
    %729 = vmatprep.subr.mxu0 0.0
    %730 = vmatpush2.xpose.msra.mxu0 0.0
    %731 = vmatprep.subr.mxu0 0.0
    %732 = vmatpush2.xpose.msra.mxu0 0.0
    %733 = vmatprep.subr.mxu0 0.0
    %734 = vmatpush2.xpose.msra.mxu0 0.0
    %735 = vmatprep.subr.mxu0 0.0
    %736 = vmatpush2.xpose.msra.mxu0 0.0
    %737 = vmatprep.subr.mxu0 0.0
    %738 = vmatpush2.xpose.msra.mxu0 0.0
    %739 = vmatprep.subr.mxu0 0.0
    %740 = vmatpush2.xpose.msra.mxu0 0.0
    %741 = vmatprep.subr.mxu0 0.0
    %742 = vmatpush2.xpose.msra.mxu0 0.0
    %743 = vmatprep.subr.mxu0 0.0
    %744 = vmatpush2.xpose.msra.mxu0 0.0
    %745 = vmatprep.subr.mxu0 0.0
    %746 = vmatpush2.xpose.msra.mxu0 0.0
    %747 = vmatprep.subr.mxu0 0.0
    %748 = vmatpush2.xpose.msra.mxu0 0.0
    %749 = vmatprep.mubr.f32.mxu0 0.0
    %750 = vmatmul.mubr.f32.gmra.mxu0 %v680
    %v751 = vpop.f32.mrf.mxu0
    %v752 = vadd.f32 0.0, %v751
    %v753 = vpop.f32.mrf.mxu0
    %754 = vdwg.mxu0
    %v755 = vlaneseq
    %v756 = vshrl.u32 %v755, 7
    %v757 = vsub.s32 0, %v756
    %v758 = vrot.slane %v676, %v757
    %v759 = vadd.f32 %v604, %v758
    %v760 = vmul.f32 %v752, 2.0
    %v761 = vsub.f32 %v759, %v760
    %v762 = vmax.f32 %v761, 0.0
    %v763 = vadd.f32 %v593, %v762
    %v764 = vsub.f32 0.0, %v763
    %v765 = vmul.f32 %v764, 1.442695
    %v766 = vpow.pop %v765
    %v767 = vstv %s424
    %v768 = vmul.f32 %v767, %v766
    %v769 = vadd.f32 %v421, %v768
    %vm770 = vcmask 64512
    %771 = vst.msk [vmem:[#allocation8] sm:$0xff] %vm770, %v769
    %p772 = scmp.eq.s32.totalorder 0, 0
    // Predicated region
    $region50: #{tpu_custom_call.1} parent=1 // pred_check
      %p773 = pneg %p772
    $region51: #{tpu_custom_call.1} parent=1 // pred_check_branch
      %775 = sbr.rel (%p773) target = $region53
    $region52: #{tpu_custom_call.1} parent=1 // pred_region
      %s776 = sld [smem:[#allocation5]]
      %s777 = sld [smem:[#allocation7]]
      %s778 = sld [smem:[#allocation2]]
      %v779 = vld [vmem:[%s7] sm:$0xf]
      %v780 = vstv %s776
      %v781 = vmul.f32 %v779, %v780
      %v782 = vld [vmem:[%s5] sm:$0xff]
      %v783 = vmul.f32 %v782, %v780
      %v784 = vmul.f32 %v781, %v781
      %vm785 = vcmask 11264
      %v786 = vsel %vm785, %v784, 0.0
      %787 = vadd.xlane.f32.xlu0 %v786
      %v788 = vpop.xlane.xlu0 %787
      %v789 = vmul.f32 %v783, %v783
      %v791 = vsel %vm80, %v789, 0
      %793 = vmatprep.subr.mxu0 0.0
      %794 = vmatpush1.xpose.msra.mxu0 0.0
      %795 = vmatprep.subr.mxu0 0.0
      %796 = vmatpush1.xpose.msra.mxu0 0.0
      %797 = vmatprep.subr.mxu0 0.0
      %798 = vmatpush1.xpose.msra.mxu0 0.0
      %799 = vmatprep.subr.mxu0 0.0
      %800 = vmatpush1.xpose.msra.mxu0 0.0
      %801 = vmatprep.subr.mxu0 0.0
      %802 = vmatpush1.xpose.msra.mxu0 0.0
      %803 = vmatprep.subr.mxu0 0.0
      %804 = vmatpush1.xpose.msra.mxu0 0.0
      %805 = vmatprep.subr.mxu0 0.0
      %806 = vmatpush1.xpose.msra.mxu0 0.0
      %807 = vmatprep.subr.mxu0 0.0
      %808 = vmatpush1.xpose.msra.mxu0 0.0
      %809 = vmatprep.subr.mxu0 0.0
      %810 = vmatpush1.xpose.msra.mxu0 0.0
      %811 = vmatprep.subr.mxu0 0.0
      %812 = vmatpush1.xpose.msra.mxu0 0.0
      %813 = vmatprep.subr.mxu0 0.0
      %814 = vmatpush1.xpose.msra.mxu0 0.0
      %815 = vmatprep.subr.mxu0 0.0
      %816 = vmatpush1.xpose.msra.mxu0 0.0
      %817 = vmatprep.subr.mxu0 0.0
      %818 = vmatpush1.xpose.msra.mxu0 0.0
      %819 = vmatprep.subr.mxu0 0.0
      %820 = vmatpush1.xpose.msra.mxu0 0.0
      %821 = vmatprep.subr.mxu0 0.0
      %822 = vmatpush1.xpose.msra.mxu0 0.0
      %823 = vmatprep.subr.mxu0 0.0
      %824 = vmatpush1.xpose.msra.mxu0 %v791
      %825 = vmatprep.subr.mxu0 0.0
      %826 = vmatpush2.xpose.msra.mxu0 0.0
      %827 = vmatprep.subr.mxu0 0.0
      %828 = vmatpush2.xpose.msra.mxu0 0.0
      %829 = vmatprep.subr.mxu0 0.0
      %830 = vmatpush2.xpose.msra.mxu0 0.0
      %831 = vmatprep.subr.mxu0 0.0
      %832 = vmatpush2.xpose.msra.mxu0 0.0
      %833 = vmatprep.subr.mxu0 0.0
      %834 = vmatpush2.xpose.msra.mxu0 0.0
      %835 = vmatprep.subr.mxu0 0.0
      %836 = vmatpush2.xpose.msra.mxu0 0.0
      %837 = vmatprep.subr.mxu0 0.0
      %838 = vmatpush2.xpose.msra.mxu0 0.0
      %839 = vmatprep.subr.mxu0 0.0
      %840 = vmatpush2.xpose.msra.mxu0 0.0
      %841 = vmatprep.subr.mxu0 0.0
      %842 = vmatpush2.xpose.msra.mxu0 0.0
      %843 = vmatprep.subr.mxu0 0.0
      %844 = vmatpush2.xpose.msra.mxu0 0.0
      %845 = vmatprep.subr.mxu0 0.0
      %846 = vmatpush2.xpose.msra.mxu0 0.0
      %847 = vmatprep.subr.mxu0 0.0
      %848 = vmatpush2.xpose.msra.mxu0 0.0
      %849 = vmatprep.subr.mxu0 0.0
      %850 = vmatpush2.xpose.msra.mxu0 0.0
      %851 = vmatprep.subr.mxu0 0.0
      %852 = vmatpush2.xpose.msra.mxu0 0.0
      %853 = vmatprep.subr.mxu0 0.0
      %854 = vmatpush2.xpose.msra.mxu0 0.0
      %855 = vmatprep.subr.mxu0 0.0
      %856 = vmatpush2.xpose.msra.mxu0 0.0
      %857 = vmatprep.mubr.f32.mxu0 0.0
      %858 = vmatmul.mubr.f32.gmra.mxu0 %v86
      %v859 = vpop.f32.mrf.mxu0
      %v860 = vadd.f32 0.0, %v859
      %v861 = vpop.f32.mrf.mxu0
      %862 = vdwg.mxu0
      %v864 = vsel %vm80, %v781, 0
      %v867 = vsel %vm80, %v783, 0
      %869 = vmatprep.subr.mxu0 0.0
      %870 = vmatpush1.xpose.msra.mxu0 0.0
      %871 = vmatprep.subr.mxu0 0.0
      %872 = vmatpush1.xpose.msra.mxu0 0.0
      %873 = vmatprep.subr.mxu0 0.0
      %874 = vmatpush1.xpose.msra.mxu0 0.0
      %875 = vmatprep.subr.mxu0 0.0
      %876 = vmatpush1.xpose.msra.mxu0 0.0
      %877 = vmatprep.subr.mxu0 0.0
      %878 = vmatpush1.xpose.msra.mxu0 0.0
      %879 = vmatprep.subr.mxu0 0.0
      %880 = vmatpush1.xpose.msra.mxu0 0.0
      %881 = vmatprep.subr.mxu0 0.0
      %882 = vmatpush1.xpose.msra.mxu0 0.0
      %883 = vmatprep.subr.mxu0 0.0
      %884 = vmatpush1.xpose.msra.mxu0 0.0
      %885 = vmatprep.subr.mxu0 0.0
      %886 = vmatpush1.xpose.msra.mxu0 0.0
      %887 = vmatprep.subr.mxu0 0.0
      %888 = vmatpush1.xpose.msra.mxu0 0.0
      %889 = vmatprep.subr.mxu0 0.0
      %890 = vmatpush1.xpose.msra.mxu0 0.0
      %891 = vmatprep.subr.mxu0 0.0
      %892 = vmatpush1.xpose.msra.mxu0 0.0
      %893 = vmatprep.subr.mxu0 0.0
      %894 = vmatpush1.xpose.msra.mxu0 0.0
      %895 = vmatprep.subr.mxu0 0.0
      %896 = vmatpush1.xpose.msra.mxu0 0.0
      %897 = vmatprep.subr.mxu0 0.0
      %898 = vmatpush1.xpose.msra.mxu0 0.0
      %899 = vmatprep.subr.mxu0 0.0
      %900 = vmatpush1.xpose.msra.mxu0 %v867
      %901 = vmatprep.subr.mxu0 0.0
      %902 = vmatpush2.xpose.msra.mxu0 0.0
      %903 = vmatprep.subr.mxu0 0.0
      %904 = vmatpush2.xpose.msra.mxu0 0.0
      %905 = vmatprep.subr.mxu0 0.0
      %906 = vmatpush2.xpose.msra.mxu0 0.0
      %907 = vmatprep.subr.mxu0 0.0
      %908 = vmatpush2.xpose.msra.mxu0 0.0
      %909 = vmatprep.subr.mxu0 0.0
      %910 = vmatpush2.xpose.msra.mxu0 0.0
      %911 = vmatprep.subr.mxu0 0.0
      %912 = vmatpush2.xpose.msra.mxu0 0.0
      %913 = vmatprep.subr.mxu0 0.0
      %914 = vmatpush2.xpose.msra.mxu0 0.0
      %915 = vmatprep.subr.mxu0 0.0
      %916 = vmatpush2.xpose.msra.mxu0 0.0
      %917 = vmatprep.subr.mxu0 0.0
      %918 = vmatpush2.xpose.msra.mxu0 0.0
      %919 = vmatprep.subr.mxu0 0.0
      %920 = vmatpush2.xpose.msra.mxu0 0.0
      %921 = vmatprep.subr.mxu0 0.0
      %922 = vmatpush2.xpose.msra.mxu0 0.0
      %923 = vmatprep.subr.mxu0 0.0
      %924 = vmatpush2.xpose.msra.mxu0 0.0
      %925 = vmatprep.subr.mxu0 0.0
      %926 = vmatpush2.xpose.msra.mxu0 0.0
      %927 = vmatprep.subr.mxu0 0.0
      %928 = vmatpush2.xpose.msra.mxu0 0.0
      %929 = vmatprep.subr.mxu0 0.0
      %930 = vmatpush2.xpose.msra.mxu0 0.0
      %931 = vmatprep.subr.mxu0 0.0
      %932 = vmatpush2.xpose.msra.mxu0 0.0
      %933 = vmatprep.mubr.f32.mxu0 0.0
      %934 = vmatmul.mubr.f32.gmra.mxu0 %v864
      %v935 = vpop.f32.mrf.mxu0
      %v936 = vadd.f32 0.0, %v935
      %v937 = vpop.f32.mrf.mxu0
      %938 = vdwg.mxu0
      %v939 = vlaneseq
      %v940 = vshrl.u32 %v939, 7
      %v941 = vsub.s32 0, %v940
      %v942 = vrot.slane %v860, %v941
      %v943 = vadd.f32 %v788, %v942
      %v944 = vmul.f32 %v936, 2.0
      %v945 = vsub.f32 %v943, %v944
      %v946 = vmax.f32 %v945, 0.0
      %v947 = vsub.f32 0.0, %v946
      %v948 = vmul.f32 %v947, 1.442695
      %v949 = vpow.pop %v948
      %v950 = vld [vmem:[%s8] sm:$0xff]
      %v951 = vstv %s777
      %v952 = vmul.f32 %v950, %v951
      %v953 = vld [vmem:[%s6] sm:$0xff]
      %v954 = vmul.f32 %v953, %v951
      %v955 = vmul.f32 %v952, %v952
      %v956 = vsel %vm251, %v955, 0.0
      %957 = vadd.xlane.f32.xlu0 %v956
      %v958 = vpop.xlane.xlu0 %957
      %v959 = vmul.f32 %v954, %v954
      %v961 = vsel %vm251, %v959, 0
      %963 = vmatprep.subr.mxu0 0.0
      %964 = vmatpush1.xpose.msra.mxu0 0.0
      %965 = vmatprep.subr.mxu0 0.0
      %966 = vmatpush1.xpose.msra.mxu0 0.0
      %967 = vmatprep.subr.mxu0 0.0
      %968 = vmatpush1.xpose.msra.mxu0 0.0
      %969 = vmatprep.subr.mxu0 0.0
      %970 = vmatpush1.xpose.msra.mxu0 0.0
      %971 = vmatprep.subr.mxu0 0.0
      %972 = vmatpush1.xpose.msra.mxu0 0.0
      %973 = vmatprep.subr.mxu0 0.0
      %974 = vmatpush1.xpose.msra.mxu0 0.0
      %975 = vmatprep.subr.mxu0 0.0
      %976 = vmatpush1.xpose.msra.mxu0 0.0
      %977 = vmatprep.subr.mxu0 0.0
      %978 = vmatpush1.xpose.msra.mxu0 0.0
      %979 = vmatprep.subr.mxu0 0.0
      %980 = vmatpush1.xpose.msra.mxu0 0.0
      %981 = vmatprep.subr.mxu0 0.0
      %982 = vmatpush1.xpose.msra.mxu0 0.0
      %983 = vmatprep.subr.mxu0 0.0
      %984 = vmatpush1.xpose.msra.mxu0 0.0
      %985 = vmatprep.subr.mxu0 0.0
      %986 = vmatpush1.xpose.msra.mxu0 0.0
      %987 = vmatprep.subr.mxu0 0.0
      %988 = vmatpush1.xpose.msra.mxu0 0.0
      %989 = vmatprep.subr.mxu0 0.0
      %990 = vmatpush1.xpose.msra.mxu0 0.0
      %991 = vmatprep.subr.mxu0 0.0
      %992 = vmatpush1.xpose.msra.mxu0 0.0
      %993 = vmatprep.subr.mxu0 0.0
      %994 = vmatpush1.xpose.msra.mxu0 %v961
      %995 = vmatprep.subr.mxu0 0.0
      %996 = vmatpush2.xpose.msra.mxu0 0.0
      %997 = vmatprep.subr.mxu0 0.0
      %998 = vmatpush2.xpose.msra.mxu0 0.0
      %999 = vmatprep.subr.mxu0 0.0
      %1000 = vmatpush2.xpose.msra.mxu0 0.0
      %1001 = vmatprep.subr.mxu0 0.0
      %1002 = vmatpush2.xpose.msra.mxu0 0.0
      %1003 = vmatprep.subr.mxu0 0.0
      %1004 = vmatpush2.xpose.msra.mxu0 0.0
      %1005 = vmatprep.subr.mxu0 0.0
      %1006 = vmatpush2.xpose.msra.mxu0 0.0
      %1007 = vmatprep.subr.mxu0 0.0
      %1008 = vmatpush2.xpose.msra.mxu0 0.0
      %1009 = vmatprep.subr.mxu0 0.0
      %1010 = vmatpush2.xpose.msra.mxu0 0.0
      %1011 = vmatprep.subr.mxu0 0.0
      %1012 = vmatpush2.xpose.msra.mxu0 0.0
      %1013 = vmatprep.subr.mxu0 0.0
      %1014 = vmatpush2.xpose.msra.mxu0 0.0
      %1015 = vmatprep.subr.mxu0 0.0
      %1016 = vmatpush2.xpose.msra.mxu0 0.0
      %1017 = vmatprep.subr.mxu0 0.0
      %1018 = vmatpush2.xpose.msra.mxu0 0.0
      %1019 = vmatprep.subr.mxu0 0.0
      %1020 = vmatpush2.xpose.msra.mxu0 0.0
      %1021 = vmatprep.subr.mxu0 0.0
      %1022 = vmatpush2.xpose.msra.mxu0 0.0
      %1023 = vmatprep.subr.mxu0 0.0
      %1024 = vmatpush2.xpose.msra.mxu0 0.0
      %1025 = vmatprep.subr.mxu0 0.0
      %1026 = vmatpush2.xpose.msra.mxu0 0.0
      %1027 = vmatprep.mubr.f32.mxu0 0.0
      %1028 = vmatmul.mubr.f32.gmra.mxu0 %v256
      %v1029 = vpop.f32.mrf.mxu0
      %v1030 = vadd.f32 0.0, %v1029
      %v1031 = vpop.f32.mrf.mxu0
      %1032 = vdwg.mxu0
      %v1034 = vsel %vm251, %v952, 0
      %v1037 = vsel %vm251, %v954, 0
      %1039 = vmatprep.subr.mxu0 0.0
      %1040 = vmatpush1.xpose.msra.mxu0 0.0
      %1041 = vmatprep.subr.mxu0 0.0
      %1042 = vmatpush1.xpose.msra.mxu0 0.0
      %1043 = vmatprep.subr.mxu0 0.0
      %1044 = vmatpush1.xpose.msra.mxu0 0.0
      %1045 = vmatprep.subr.mxu0 0.0
      %1046 = vmatpush1.xpose.msra.mxu0 0.0
      %1047 = vmatprep.subr.mxu0 0.0
      %1048 = vmatpush1.xpose.msra.mxu0 0.0
      %1049 = vmatprep.subr.mxu0 0.0
      %1050 = vmatpush1.xpose.msra.mxu0 0.0
      %1051 = vmatprep.subr.mxu0 0.0
      %1052 = vmatpush1.xpose.msra.mxu0 0.0
      %1053 = vmatprep.subr.mxu0 0.0
      %1054 = vmatpush1.xpose.msra.mxu0 0.0
      %1055 = vmatprep.subr.mxu0 0.0
      %1056 = vmatpush1.xpose.msra.mxu0 0.0
      %1057 = vmatprep.subr.mxu0 0.0
      %1058 = vmatpush1.xpose.msra.mxu0 0.0
      %1059 = vmatprep.subr.mxu0 0.0
      %1060 = vmatpush1.xpose.msra.mxu0 0.0
      %1061 = vmatprep.subr.mxu0 0.0
      %1062 = vmatpush1.xpose.msra.mxu0 0.0
      %1063 = vmatprep.subr.mxu0 0.0
      %1064 = vmatpush1.xpose.msra.mxu0 0.0
      %1065 = vmatprep.subr.mxu0 0.0
      %1066 = vmatpush1.xpose.msra.mxu0 0.0
      %1067 = vmatprep.subr.mxu0 0.0
      %1068 = vmatpush1.xpose.msra.mxu0 0.0
      %1069 = vmatprep.subr.mxu0 0.0
      %1070 = vmatpush1.xpose.msra.mxu0 %v1037
      %1071 = vmatprep.subr.mxu0 0.0
      %1072 = vmatpush2.xpose.msra.mxu0 0.0
      %1073 = vmatprep.subr.mxu0 0.0
      %1074 = vmatpush2.xpose.msra.mxu0 0.0
      %1075 = vmatprep.subr.mxu0 0.0
      %1076 = vmatpush2.xpose.msra.mxu0 0.0
      %1077 = vmatprep.subr.mxu0 0.0
      %1078 = vmatpush2.xpose.msra.mxu0 0.0
      %1079 = vmatprep.subr.mxu0 0.0
      %1080 = vmatpush2.xpose.msra.mxu0 0.0
      %1081 = vmatprep.subr.mxu0 0.0
      %1082 = vmatpush2.xpose.msra.mxu0 0.0
      %1083 = vmatprep.subr.mxu0 0.0
      %1084 = vmatpush2.xpose.msra.mxu0 0.0
      %1085 = vmatprep.subr.mxu0 0.0
      %1086 = vmatpush2.xpose.msra.mxu0 0.0
      %1087 = vmatprep.subr.mxu0 0.0
      %1088 = vmatpush2.xpose.msra.mxu0 0.0
      %1089 = vmatprep.subr.mxu0 0.0
      %1090 = vmatpush2.xpose.msra.mxu0 0.0
      %1091 = vmatprep.subr.mxu0 0.0
      %1092 = vmatpush2.xpose.msra.mxu0 0.0
      %1093 = vmatprep.subr.mxu0 0.0
      %1094 = vmatpush2.xpose.msra.mxu0 0.0
      %1095 = vmatprep.subr.mxu0 0.0
      %1096 = vmatpush2.xpose.msra.mxu0 0.0
      %1097 = vmatprep.subr.mxu0 0.0
      %1098 = vmatpush2.xpose.msra.mxu0 0.0
      %1099 = vmatprep.subr.mxu0 0.0
      %1100 = vmatpush2.xpose.msra.mxu0 0.0
      %1101 = vmatprep.subr.mxu0 0.0
      %1102 = vmatpush2.xpose.msra.mxu0 0.0
      %1103 = vmatprep.mubr.f32.mxu0 0.0
      %1104 = vmatmul.mubr.f32.gmra.mxu0 %v1034
      %v1105 = vpop.f32.mrf.mxu0
      %v1106 = vadd.f32 0.0, %v1105
      %v1107 = vpop.f32.mrf.mxu0
      %1108 = vdwg.mxu0
      %v1109 = vlaneseq
      %v1110 = vshrl.u32 %v1109, 7
      %v1111 = vsub.s32 0, %v1110
      %v1112 = vrot.slane %v1030, %v1111
      %v1113 = vadd.f32 %v958, %v1112
      %v1114 = vmul.f32 %v1106, 2.0
      %v1115 = vsub.f32 %v1113, %v1114
      %v1116 = vmax.f32 %v1115, 0.0
      %v1117 = vsub.f32 0.0, %v1116
      %v1118 = vmul.f32 %v1117, 1.442695
      %v1119 = vpow.pop %v1118
      %v1122 = vunpack.c.l.s4 1966171168
      %v1123 = vunpack.c.0.s8 %v1122
      %v1124 = vlaneseq
      %v1125 = vshrl.u32 %v1124, 7
      %v1126 = vsub.s32 %v1123, %v1125
      %v1127 = vrot.slane %v949, %v1126
      %v1128 = vcombine.high %v1127, %v1127
      %v1130 = vunpack.c.l.s4 1966171168
      %v1131 = vunpack.c.0.s8 %v1130
      %v1132 = vlaneseq
      %v1133 = vshrl.u32 %v1132, 7
      %v1134 = vsub.s32 %v1131, %v1133
      %v1135 = vrot.slane %v1127, %v1134
      %v1137 = vunpack.c.l.s4 1966171168
      %v1138 = vunpack.c.0.s8 %v1137
      %v1139 = vlaneseq
      %v1140 = vshrl.u32 %v1139, 7
      %v1141 = vsub.s32 %v1138, %v1140
      %v1142 = vrot.slane %v1128, %v1141
      %v1143 = vcombine.high %v1135, %v1135
      %v1144 = vcombine.high %v1142, %v1142
      %v1145 = vlaneseq
      %v1146 = vshrl.u32 %v1145, 7
      %v1147 = vsub.s32 0, %v1146
      %v1148 = vrot.slane %v1135, %v1147
      %v1149 = vlaneseq
      %v1150 = vshrl.u32 %v1149, 7
      %v1151 = vsub.s32 0, %v1150
      %v1152 = vrot.slane %v1142, %v1151
      %v1153 = vlaneseq
      %v1154 = vshrl.u32 %v1153, 7
      %v1155 = vsub.s32 0, %v1154
      %v1156 = vrot.slane %v1143, %v1155
      %v1157 = vlaneseq
      %v1158 = vshrl.u32 %v1157, 7
      %v1159 = vsub.s32 0, %v1158
      %v1160 = vrot.slane %v1144, %v1159
      %v1165 = vmul.f32 %v1148, %v1119
      %v1166 = vmul.f32 %v1152, %v1119
      %v1167 = vmul.f32 %v1156, %v1119
      %v1168 = vmul.f32 %v1160, %v1119
      %v1169 = vstv %s778
      %v1170 = vmul.f32 %v1169, %v1165
      %v1171 = vmul.f32 %v1169, %v1166
      %v1172 = vmul.f32 %v1169, %v1167
      %v1173 = vmul.f32 %v1169, %v1168
      %v1174 = vadd.f32 %v1170, 0.0
      %v1175 = vadd.f32 %v1171, 0.0
      %v1176 = vadd.f32 %v1172, 0.0
      %v1177 = vadd.f32 %v1173, 0.0
      %s1178 = sld [smem:[#allocation5 + $0x1]]
      %s1179 = sld [smem:[#allocation7 + $0x1]]
      %s1180 = sld [smem:[#allocation2 + $0x1]]
      %s1181 = scalar_lea.vmem %s7, 4
      %v1182 = vld [vmem:[%s1181] sm:$0xf]
      %v1183 = vstv %s1178
      %v1184 = vmul.f32 %v1182, %v1183
      %v1185 = vld [vmem:[%s429] sm:$0xff]
      %v1186 = vmul.f32 %v1185, %v1183
      %v1187 = vmul.f32 %v1184, %v1184
      %v1188 = vsel %vm785, %v1187, 0.0
      %1189 = vadd.xlane.f32.xlu0 %v1188
      %v1190 = vpop.xlane.xlu0 %1189
      %v1191 = vmul.f32 %v1186, %v1186
      %v1193 = vsel %vm80, %v1191, 0
      %1195 = vmatprep.subr.mxu0 0.0
      %1196 = vmatpush1.xpose.msra.mxu0 0.0
      %1197 = vmatprep.subr.mxu0 0.0
      %1198 = vmatpush1.xpose.msra.mxu0 0.0
      %1199 = vmatprep.subr.mxu0 0.0
      %1200 = vmatpush1.xpose.msra.mxu0 0.0
      %1201 = vmatprep.subr.mxu0 0.0
      %1202 = vmatpush1.xpose.msra.mxu0 0.0
      %1203 = vmatprep.subr.mxu0 0.0
      %1204 = vmatpush1.xpose.msra.mxu0 0.0
      %1205 = vmatprep.subr.mxu0 0.0
      %1206 = vmatpush1.xpose.msra.mxu0 0.0
      %1207 = vmatprep.subr.mxu0 0.0
      %1208 = vmatpush1.xpose.msra.mxu0 0.0
      %1209 = vmatprep.subr.mxu0 0.0
      %1210 = vmatpush1.xpose.msra.mxu0 0.0
      %1211 = vmatprep.subr.mxu0 0.0
      %1212 = vmatpush1.xpose.msra.mxu0 0.0
      %1213 = vmatprep.subr.mxu0 0.0
      %1214 = vmatpush1.xpose.msra.mxu0 0.0
      %1215 = vmatprep.subr.mxu0 0.0
      %1216 = vmatpush1.xpose.msra.mxu0 0.0
      %1217 = vmatprep.subr.mxu0 0.0
      %1218 = vmatpush1.xpose.msra.mxu0 0.0
      %1219 = vmatprep.subr.mxu0 0.0
      %1220 = vmatpush1.xpose.msra.mxu0 0.0
      %1221 = vmatprep.subr.mxu0 0.0
      %1222 = vmatpush1.xpose.msra.mxu0 0.0
      %1223 = vmatprep.subr.mxu0 0.0
      %1224 = vmatpush1.xpose.msra.mxu0 0.0
      %1225 = vmatprep.subr.mxu0 0.0
      %1226 = vmatpush1.xpose.msra.mxu0 %v1193
      %1227 = vmatprep.subr.mxu0 0.0
      %1228 = vmatpush2.xpose.msra.mxu0 0.0
      %1229 = vmatprep.subr.mxu0 0.0
      %1230 = vmatpush2.xpose.msra.mxu0 0.0
      %1231 = vmatprep.subr.mxu0 0.0
      %1232 = vmatpush2.xpose.msra.mxu0 0.0
      %1233 = vmatprep.subr.mxu0 0.0
      %1234 = vmatpush2.xpose.msra.mxu0 0.0
      %1235 = vmatprep.subr.mxu0 0.0
      %1236 = vmatpush2.xpose.msra.mxu0 0.0
      %1237 = vmatprep.subr.mxu0 0.0
      %1238 = vmatpush2.xpose.msra.mxu0 0.0
      %1239 = vmatprep.subr.mxu0 0.0
      %1240 = vmatpush2.xpose.msra.mxu0 0.0
      %1241 = vmatprep.subr.mxu0 0.0
      %1242 = vmatpush2.xpose.msra.mxu0 0.0
      %1243 = vmatprep.subr.mxu0 0.0
      %1244 = vmatpush2.xpose.msra.mxu0 0.0
      %1245 = vmatprep.subr.mxu0 0.0
      %1246 = vmatpush2.xpose.msra.mxu0 0.0
      %1247 = vmatprep.subr.mxu0 0.0
      %1248 = vmatpush2.xpose.msra.mxu0 0.0
      %1249 = vmatprep.subr.mxu0 0.0
      %1250 = vmatpush2.xpose.msra.mxu0 0.0
      %1251 = vmatprep.subr.mxu0 0.0
      %1252 = vmatpush2.xpose.msra.mxu0 0.0
      %1253 = vmatprep.subr.mxu0 0.0
      %1254 = vmatpush2.xpose.msra.mxu0 0.0
      %1255 = vmatprep.subr.mxu0 0.0
      %1256 = vmatpush2.xpose.msra.mxu0 0.0
      %1257 = vmatprep.subr.mxu0 0.0
      %1258 = vmatpush2.xpose.msra.mxu0 0.0
      %1259 = vmatprep.mubr.f32.mxu0 0.0
      %1260 = vmatmul.mubr.f32.gmra.mxu0 %v86
      %v1261 = vpop.f32.mrf.mxu0
      %v1262 = vadd.f32 0.0, %v1261
      %v1263 = vpop.f32.mrf.mxu0
      %1264 = vdwg.mxu0
      %v1266 = vsel %vm80, %v1184, 0
      %v1269 = vsel %vm80, %v1186, 0
      %1271 = vmatprep.subr.mxu0 0.0
      %1272 = vmatpush1.xpose.msra.mxu0 0.0
      %1273 = vmatprep.subr.mxu0 0.0
      %1274 = vmatpush1.xpose.msra.mxu0 0.0
      %1275 = vmatprep.subr.mxu0 0.0
      %1276 = vmatpush1.xpose.msra.mxu0 0.0
      %1277 = vmatprep.subr.mxu0 0.0
      %1278 = vmatpush1.xpose.msra.mxu0 0.0
      %1279 = vmatprep.subr.mxu0 0.0
      %1280 = vmatpush1.xpose.msra.mxu0 0.0
      %1281 = vmatprep.subr.mxu0 0.0
      %1282 = vmatpush1.xpose.msra.mxu0 0.0
      %1283 = vmatprep.subr.mxu0 0.0
      %1284 = vmatpush1.xpose.msra.mxu0 0.0
      %1285 = vmatprep.subr.mxu0 0.0
      %1286 = vmatpush1.xpose.msra.mxu0 0.0
      %1287 = vmatprep.subr.mxu0 0.0
      %1288 = vmatpush1.xpose.msra.mxu0 0.0
      %1289 = vmatprep.subr.mxu0 0.0
      %1290 = vmatpush1.xpose.msra.mxu0 0.0
      %1291 = vmatprep.subr.mxu0 0.0
      %1292 = vmatpush1.xpose.msra.mxu0 0.0
      %1293 = vmatprep.subr.mxu0 0.0
      %1294 = vmatpush1.xpose.msra.mxu0 0.0
      %1295 = vmatprep.subr.mxu0 0.0
      %1296 = vmatpush1.xpose.msra.mxu0 0.0
      %1297 = vmatprep.subr.mxu0 0.0
      %1298 = vmatpush1.xpose.msra.mxu0 0.0
      %1299 = vmatprep.subr.mxu0 0.0
      %1300 = vmatpush1.xpose.msra.mxu0 0.0
      %1301 = vmatprep.subr.mxu0 0.0
      %1302 = vmatpush1.xpose.msra.mxu0 %v1269
      %1303 = vmatprep.subr.mxu0 0.0
      %1304 = vmatpush2.xpose.msra.mxu0 0.0
      %1305 = vmatprep.subr.mxu0 0.0
      %1306 = vmatpush2.xpose.msra.mxu0 0.0
      %1307 = vmatprep.subr.mxu0 0.0
      %1308 = vmatpush2.xpose.msra.mxu0 0.0
      %1309 = vmatprep.subr.mxu0 0.0
      %1310 = vmatpush2.xpose.msra.mxu0 0.0
      %1311 = vmatprep.subr.mxu0 0.0
      %1312 = vmatpush2.xpose.msra.mxu0 0.0
      %1313 = vmatprep.subr.mxu0 0.0
      %1314 = vmatpush2.xpose.msra.mxu0 0.0
      %1315 = vmatprep.subr.mxu0 0.0
      %1316 = vmatpush2.xpose.msra.mxu0 0.0
      %1317 = vmatprep.subr.mxu0 0.0
      %1318 = vmatpush2.xpose.msra.mxu0 0.0
      %1319 = vmatprep.subr.mxu0 0.0
      %1320 = vmatpush2.xpose.msra.mxu0 0.0
      %1321 = vmatprep.subr.mxu0 0.0
      %1322 = vmatpush2.xpose.msra.mxu0 0.0
      %1323 = vmatprep.subr.mxu0 0.0
      %1324 = vmatpush2.xpose.msra.mxu0 0.0
      %1325 = vmatprep.subr.mxu0 0.0
      %1326 = vmatpush2.xpose.msra.mxu0 0.0
      %1327 = vmatprep.subr.mxu0 0.0
      %1328 = vmatpush2.xpose.msra.mxu0 0.0
      %1329 = vmatprep.subr.mxu0 0.0
      %1330 = vmatpush2.xpose.msra.mxu0 0.0
      %1331 = vmatprep.subr.mxu0 0.0
      %1332 = vmatpush2.xpose.msra.mxu0 0.0
      %1333 = vmatprep.subr.mxu0 0.0
      %1334 = vmatpush2.xpose.msra.mxu0 0.0
      %1335 = vmatprep.mubr.f32.mxu0 0.0
      %1336 = vmatmul.mubr.f32.gmra.mxu0 %v1266
      %v1337 = vpop.f32.mrf.mxu0
      %v1338 = vadd.f32 0.0, %v1337
      %v1339 = vpop.f32.mrf.mxu0
      %1340 = vdwg.mxu0
      %v1341 = vlaneseq
      %v1342 = vshrl.u32 %v1341, 7
      %v1343 = vsub.s32 0, %v1342
      %v1344 = vrot.slane %v1262, %v1343
      %v1345 = vadd.f32 %v1190, %v1344
      %v1346 = vmul.f32 %v1338, 2.0
      %v1347 = vsub.f32 %v1345, %v1346
      %v1348 = vmax.f32 %v1347, 0.0
      %v1349 = vsub.f32 0.0, %v1348
      %v1350 = vmul.f32 %v1349, 1.442695
      %v1351 = vpow.pop %v1350
      %s1352 = scalar_lea.vmem %s8, 8
      %v1353 = vld [vmem:[%s1352] sm:$0xff]
      %v1354 = vstv %s1179
      %v1355 = vmul.f32 %v1353, %v1354
      %v1356 = vld [vmem:[%s598] sm:$0xff]
      %v1357 = vmul.f32 %v1356, %v1354
      %v1358 = vmul.f32 %v1355, %v1355
      %v1359 = vsel %vm251, %v1358, 0.0
      %1360 = vadd.xlane.f32.xlu0 %v1359
      %v1361 = vpop.xlane.xlu0 %1360
      %v1362 = vmul.f32 %v1357, %v1357
      %v1364 = vsel %vm251, %v1362, 0
      %1366 = vmatprep.subr.mxu0 0.0
      %1367 = vmatpush1.xpose.msra.mxu0 0.0
      %1368 = vmatprep.subr.mxu0 0.0
      %1369 = vmatpush1.xpose.msra.mxu0 0.0
      %1370 = vmatprep.subr.mxu0 0.0
      %1371 = vmatpush1.xpose.msra.mxu0 0.0
      %1372 = vmatprep.subr.mxu0 0.0
      %1373 = vmatpush1.xpose.msra.mxu0 0.0
      %1374 = vmatprep.subr.mxu0 0.0
      %1375 = vmatpush1.xpose.msra.mxu0 0.0
      %1376 = vmatprep.subr.mxu0 0.0
      %1377 = vmatpush1.xpose.msra.mxu0 0.0
      %1378 = vmatprep.subr.mxu0 0.0
      %1379 = vmatpush1.xpose.msra.mxu0 0.0
      %1380 = vmatprep.subr.mxu0 0.0
      %1381 = vmatpush1.xpose.msra.mxu0 0.0
      %1382 = vmatprep.subr.mxu0 0.0
      %1383 = vmatpush1.xpose.msra.mxu0 0.0
      %1384 = vmatprep.subr.mxu0 0.0
      %1385 = vmatpush1.xpose.msra.mxu0 0.0
      %1386 = vmatprep.subr.mxu0 0.0
      %1387 = vmatpush1.xpose.msra.mxu0 0.0
      %1388 = vmatprep.subr.mxu0 0.0
      %1389 = vmatpush1.xpose.msra.mxu0 0.0
      %1390 = vmatprep.subr.mxu0 0.0
      %1391 = vmatpush1.xpose.msra.mxu0 0.0
      %1392 = vmatprep.subr.mxu0 0.0
      %1393 = vmatpush1.xpose.msra.mxu0 0.0
      %1394 = vmatprep.subr.mxu0 0.0
      %1395 = vmatpush1.xpose.msra.mxu0 0.0
      %1396 = vmatprep.subr.mxu0 0.0
      %1397 = vmatpush1.xpose.msra.mxu0 %v1364
      %1398 = vmatprep.subr.mxu0 0.0
      %1399 = vmatpush2.xpose.msra.mxu0 0.0
      %1400 = vmatprep.subr.mxu0 0.0
      %1401 = vmatpush2.xpose.msra.mxu0 0.0
      %1402 = vmatprep.subr.mxu0 0.0
      %1403 = vmatpush2.xpose.msra.mxu0 0.0
      %1404 = vmatprep.subr.mxu0 0.0
      %1405 = vmatpush2.xpose.msra.mxu0 0.0
      %1406 = vmatprep.subr.mxu0 0.0
      %1407 = vmatpush2.xpose.msra.mxu0 0.0
      %1408 = vmatprep.subr.mxu0 0.0
      %1409 = vmatpush2.xpose.msra.mxu0 0.0
      %1410 = vmatprep.subr.mxu0 0.0
      %1411 = vmatpush2.xpose.msra.mxu0 0.0
      %1412 = vmatprep.subr.mxu0 0.0
      %1413 = vmatpush2.xpose.msra.mxu0 0.0
      %1414 = vmatprep.subr.mxu0 0.0
      %1415 = vmatpush2.xpose.msra.mxu0 0.0
      %1416 = vmatprep.subr.mxu0 0.0
      %1417 = vmatpush2.xpose.msra.mxu0 0.0
      %1418 = vmatprep.subr.mxu0 0.0
      %1419 = vmatpush2.xpose.msra.mxu0 0.0
      %1420 = vmatprep.subr.mxu0 0.0
      %1421 = vmatpush2.xpose.msra.mxu0 0.0
      %1422 = vmatprep.subr.mxu0 0.0
      %1423 = vmatpush2.xpose.msra.mxu0 0.0
      %1424 = vmatprep.subr.mxu0 0.0
      %1425 = vmatpush2.xpose.msra.mxu0 0.0
      %1426 = vmatprep.subr.mxu0 0.0
      %1427 = vmatpush2.xpose.msra.mxu0 0.0
      %1428 = vmatprep.subr.mxu0 0.0
      %1429 = vmatpush2.xpose.msra.mxu0 0.0
      %1430 = vmatprep.mubr.f32.mxu0 0.0
      %1431 = vmatmul.mubr.f32.gmra.mxu0 %v256
      %v1432 = vpop.f32.mrf.mxu0
      %v1433 = vadd.f32 0.0, %v1432
      %v1434 = vpop.f32.mrf.mxu0
      %1435 = vdwg.mxu0
      %v1437 = vsel %vm251, %v1355, 0
      %v1440 = vsel %vm251, %v1357, 0
      %1442 = vmatprep.subr.mxu0 0.0
      %1443 = vmatpush1.xpose.msra.mxu0 0.0
      %1444 = vmatprep.subr.mxu0 0.0
      %1445 = vmatpush1.xpose.msra.mxu0 0.0
      %1446 = vmatprep.subr.mxu0 0.0
      %1447 = vmatpush1.xpose.msra.mxu0 0.0
      %1448 = vmatprep.subr.mxu0 0.0
      %1449 = vmatpush1.xpose.msra.mxu0 0.0
      %1450 = vmatprep.subr.mxu0 0.0
      %1451 = vmatpush1.xpose.msra.mxu0 0.0
      %1452 = vmatprep.subr.mxu0 0.0
      %1453 = vmatpush1.xpose.msra.mxu0 0.0
      %1454 = vmatprep.subr.mxu0 0.0
      %1455 = vmatpush1.xpose.msra.mxu0 0.0
      %1456 = vmatprep.subr.mxu0 0.0
      %1457 = vmatpush1.xpose.msra.mxu0 0.0
      %1458 = vmatprep.subr.mxu0 0.0
      %1459 = vmatpush1.xpose.msra.mxu0 0.0
      %1460 = vmatprep.subr.mxu0 0.0
      %1461 = vmatpush1.xpose.msra.mxu0 0.0
      %1462 = vmatprep.subr.mxu0 0.0
      %1463 = vmatpush1.xpose.msra.mxu0 0.0
      %1464 = vmatprep.subr.mxu0 0.0
      %1465 = vmatpush1.xpose.msra.mxu0 0.0
      %1466 = vmatprep.subr.mxu0 0.0
      %1467 = vmatpush1.xpose.msra.mxu0 0.0
      %1468 = vmatprep.subr.mxu0 0.0
      %1469 = vmatpush1.xpose.msra.mxu0 0.0
      %1470 = vmatprep.subr.mxu0 0.0
      %1471 = vmatpush1.xpose.msra.mxu0 0.0
      %1472 = vmatprep.subr.mxu0 0.0
      %1473 = vmatpush1.xpose.msra.mxu0 %v1440
      %1474 = vmatprep.subr.mxu0 0.0
      %1475 = vmatpush2.xpose.msra.mxu0 0.0
      %1476 = vmatprep.subr.mxu0 0.0
      %1477 = vmatpush2.xpose.msra.mxu0 0.0
      %1478 = vmatprep.subr.mxu0 0.0
      %1479 = vmatpush2.xpose.msra.mxu0 0.0
      %1480 = vmatprep.subr.mxu0 0.0
      %1481 = vmatpush2.xpose.msra.mxu0 0.0
      %1482 = vmatprep.subr.mxu0 0.0
      %1483 = vmatpush2.xpose.msra.mxu0 0.0
      %1484 = vmatprep.subr.mxu0 0.0
      %1485 = vmatpush2.xpose.msra.mxu0 0.0
      %1486 = vmatprep.subr.mxu0 0.0
      %1487 = vmatpush2.xpose.msra.mxu0 0.0
      %1488 = vmatprep.subr.mxu0 0.0
      %1489 = vmatpush2.xpose.msra.mxu0 0.0
      %1490 = vmatprep.subr.mxu0 0.0
      %1491 = vmatpush2.xpose.msra.mxu0 0.0
      %1492 = vmatprep.subr.mxu0 0.0
      %1493 = vmatpush2.xpose.msra.mxu0 0.0
      %1494 = vmatprep.subr.mxu0 0.0
      %1495 = vmatpush2.xpose.msra.mxu0 0.0
      %1496 = vmatprep.subr.mxu0 0.0
      %1497 = vmatpush2.xpose.msra.mxu0 0.0
      %1498 = vmatprep.subr.mxu0 0.0
      %1499 = vmatpush2.xpose.msra.mxu0 0.0
      %1500 = vmatprep.subr.mxu0 0.0
      %1501 = vmatpush2.xpose.msra.mxu0 0.0
      %1502 = vmatprep.subr.mxu0 0.0
      %1503 = vmatpush2.xpose.msra.mxu0 0.0
      %1504 = vmatprep.subr.mxu0 0.0
      %1505 = vmatpush2.xpose.msra.mxu0 0.0
      %1506 = vmatprep.mubr.f32.mxu0 0.0
      %1507 = vmatmul.mubr.f32.gmra.mxu0 %v1437
      %v1508 = vpop.f32.mrf.mxu0
      %v1509 = vadd.f32 0.0, %v1508
      %v1510 = vpop.f32.mrf.mxu0
      %1511 = vdwg.mxu0
      %v1512 = vlaneseq
      %v1513 = vshrl.u32 %v1512, 7
      %v1514 = vsub.s32 0, %v1513
      %v1515 = vrot.slane %v1433, %v1514
      %v1516 = vadd.f32 %v1361, %v1515
      %v1517 = vmul.f32 %v1509, 2.0
      %v1518 = vsub.f32 %v1516, %v1517
      %v1519 = vmax.f32 %v1518, 0.0
      %v1520 = vsub.f32 0.0, %v1519
      %v1521 = vmul.f32 %v1520, 1.442695
      %v1522 = vpow.pop %v1521
      %v1525 = vunpack.c.l.s4 1966171168
      %v1526 = vunpack.c.0.s8 %v1525
      %v1527 = vlaneseq
      %v1528 = vshrl.u32 %v1527, 7
      %v1529 = vsub.s32 %v1526, %v1528
      %v1530 = vrot.slane %v1351, %v1529
      %v1531 = vcombine.high %v1530, %v1530
      %v1533 = vunpack.c.l.s4 1966171168
      %v1534 = vunpack.c.0.s8 %v1533
      %v1535 = vlaneseq
      %v1536 = vshrl.u32 %v1535, 7
      %v1537 = vsub.s32 %v1534, %v1536
      %v1538 = vrot.slane %v1530, %v1537
      %v1540 = vunpack.c.l.s4 1966171168
      %v1541 = vunpack.c.0.s8 %v1540
      %v1542 = vlaneseq
      %v1543 = vshrl.u32 %v1542, 7
      %v1544 = vsub.s32 %v1541, %v1543
      %v1545 = vrot.slane %v1531, %v1544
      %v1546 = vcombine.high %v1538, %v1538
      %v1547 = vcombine.high %v1545, %v1545
      %v1548 = vlaneseq
      %v1549 = vshrl.u32 %v1548, 7
      %v1550 = vsub.s32 0, %v1549
      %v1551 = vrot.slane %v1538, %v1550
      %v1552 = vlaneseq
      %v1553 = vshrl.u32 %v1552, 7
      %v1554 = vsub.s32 0, %v1553
      %v1555 = vrot.slane %v1545, %v1554
      %v1556 = vlaneseq
      %v1557 = vshrl.u32 %v1556, 7
      %v1558 = vsub.s32 0, %v1557
      %v1559 = vrot.slane %v1546, %v1558
      %v1560 = vlaneseq
      %v1561 = vshrl.u32 %v1560, 7
      %v1562 = vsub.s32 0, %v1561
      %v1563 = vrot.slane %v1547, %v1562
      %v1568 = vmul.f32 %v1551, %v1522
      %v1569 = vmul.f32 %v1555, %v1522
      %v1570 = vmul.f32 %v1559, %v1522
      %v1571 = vmul.f32 %v1563, %v1522
      %v1572 = vstv %s1180
      %v1573 = vmul.f32 %v1572, %v1568
      %v1574 = vmul.f32 %v1572, %v1569
      %v1575 = vmul.f32 %v1572, %v1570
      %v1576 = vmul.f32 %v1572, %v1571
      %v1577 = vadd.f32 %v1174, %v1573
      %v1578 = vadd.f32 %v1175, %v1574
      %v1579 = vadd.f32 %v1176, %v1575
      %v1580 = vadd.f32 %v1177, %v1576
      %1581 = vst.msk [vmem:[%s10] sm:$0xff] %vm770, %v1577
      %1582 = vst.msk [vmem:[%s10 + $0x8] sm:$0xff] %vm770, %v1578
      %1583 = vst.msk [vmem:[%s10 + $0x10] sm:$0xff] %vm770, %v1579
      %1584 = vst.msk [vmem:[%s10 + $0x18] sm:$0xff] %vm770, %v1580
    $region53: #{tpu_custom_call.1} parent=1 // pred_fallthru
      _
    // Predicated region
    $region54: #{tpu_custom_call.1} parent=1 // pred_check
      _
    $region55: #{tpu_custom_call.1} parent=1 // pred_check_branch
      %1586 = sbr.rel (0) target = $region57
    $region56: #{tpu_custom_call.1} parent=1 // pred_region
      %s1588 = ssub.s32 128, 128
      %1589 = vsyncadd [#allocation3], %s1588
      %s1591 = sshll.u32 [#allocation8], 4
      %s1592 = int_to_ptr.vmem [resolvable:$true] %s1591
      %1594 = dma.vmem_to_hbm [thread:$0]  %s1592, 128, %s9, [#allocation3]
    $region57: #{tpu_custom_call.1} parent=1 // pred_fallthru
      _
    // Predicated region
    $region58: #{tpu_custom_call.1} parent=1 // pred_check
      _
    $region59: #{tpu_custom_call.1} parent=1 // pred_check_branch
      %1596 = sbr.rel (0) target = $region61
    $region60: #{tpu_custom_call.1} parent=1 // pred_region
      _
    $region61: #{tpu_custom_call.1} parent=1 // pred_fallthru
      _
    // Predicated region
    $region62: #{tpu_custom_call.1} parent=1 // pred_check
      _
    $region63: #{tpu_custom_call.1} parent=1 // pred_check_branch
      %1598 = sbr.rel (0) target = $region65
    $region64: #{tpu_custom_call.1} parent=1 // pred_region
      %1599 = dma.done [#allocation3], 128
    $region65: #{tpu_custom_call.1} parent=1 // pred_fallthru
      _
    // Predicated region
    $region66: #{tpu_custom_call.1} parent=1 // pred_check
      _
    $region67: #{tpu_custom_call.1} parent=1 // pred_check_branch
      %1601 = sbr.rel (0) target = $region69
    $region68: #{tpu_custom_call.1} parent=1 // pred_region
      _
    $region69: #{tpu_custom_call.1} parent=1 // pred_fallthru
      _
    %1602 = vsyncpa [#allocation3], 1
    %1603 = vsyncpa [#allocation4], 1
    %1604 = vsyncpa [#allocation6], 1

</llo_original>
